<compile_context>
chip_gen: v6e
topology: v6e:2x2x1
jax: 0.10.0
libtpu: 0.0.40
codegen_flags: <defaults>
</compile_context>

<pallas_src>
import functools
import math
from typing import NamedTuple

import jax
import jax.numpy as jnp
from jax.experimental import pallas as pl
from jax.experimental.pallas import tpu as pltpu


# ---------------------------------------------------------------------------
# Fused CNN + LSTM + FC kernel (single invocation, all data resident in VMEM).
# ---------------------------------------------------------------------------
def _cnn_lstm_kernel(x_ref, wconv_ref, bconv_ref, wih_ref, whh_ref, bg_ref,
                     wfc_ref, bfc_ref, o_ref, gx_ref,
                     *, H, GS, K, Bp, Tc, unroll):
    # x_ref:     (T*Bp, Dp)    bf16  time-major rows, Bp rows per timestep
    # wconv_ref: (K, Dp, Cp)   bf16  conv taps, already transposed to (D, C)
    # bconv_ref: (1, Cp)       f32
    # wih_ref:   (Cp, Gp)      bf16  packed / per-gate-padded W_ih^T
    # whh_ref:   (Hp, Gp)      bf16  packed / per-gate-padded W_hh^T
    # bg_ref:    (1, Gp)       f32   packed (b_ih + b_hh)
    # wfc_ref:   (Hp, Op)      bf16  W_fc^T
    # bfc_ref:   (1, Op)       f32
    # o_ref:     (Bp, Op)      f32   output
    # gx_ref:    (Tc*Bp, Gp)   bf16  VMEM scratch (input-side gate preacts, no bias)
    Cp = wconv_ref.shape[2]
    Hp = whh_ref.shape[0]

    # ---- Conv1d (valid, stride 1) + ReLU + input-side gate preacts ---------
    # Row-chunked so the f32 accumulator stays bounded (~32 vregs) as Tc*Bp grows.
    def conv_gx_block(row0, nrows):
        acc = jnp.zeros((nrows, Cp), jnp.float32)
        for k in range(K):                                # K is small & static
            xk = x_ref[pl.ds(row0 + k * Bp, nrows)]       # (nrows, Dp) bf16
            acc = acc + jnp.dot(xk, wconv_ref[k],
                                preferred_element_type=jnp.float32)
        acc = jnp.maximum(acc + bconv_ref[...], 0.0).astype(jnp.bfloat16)
        gx_ref[pl.ds(row0, nrows)] = jnp.dot(
            acc, wih_ref[...],
            preferred_element_type=jnp.float32).astype(gx_ref.dtype)

    tc_chunk = max(1, min(Tc, 256 // Bp))                 # timesteps per chunk
    n_full = Tc // tc_chunk
    rem = Tc - n_full * tc_chunk
    rows_chunk = tc_chunk * Bp
    if n_full == 1 and rem == 0:
        conv_gx_block(0, Tc * Bp)
    else:
        def chunk_body(ci, carry):
            conv_gx_block(pl.multiple_of(ci * rows_chunk, 8), rows_chunk)
            return carry
        jax.lax.fori_loop(0, n_full, chunk_body, 0)
        if rem:
            conv_gx_block(n_full * rows_chunk, rem * Bp)

    # ---- LSTM recurrence: only h @ W_hh per step (gate order i, f, g, o) ---
    bg = bg_ref[...]                                      # hoisted f32 bias load
    if Hp > H:
        zero_tail = jnp.zeros((Bp, Hp - H), jnp.float32)  # hoisted (no CSE in loop)

    def step(t, carry):
        h, c = carry                                      # h:(Bp,Hp) f32, c:(Bp,H) f32
        gh = jnp.dot(h.astype(jnp.bfloat16), whh_ref[...],
                     preferred_element_type=jnp.float32)  # (Bp, Gp)
        row = pl.multiple_of(t * Bp, 8)
        g = gx_ref[pl.ds(row, Bp)].astype(jnp.float32) + bg + gh
        s = jax.nn.sigmoid(g)                             # whole packed vreg
        th = jnp.tanh(g)                                  # whole packed vreg
        i_g = s[:, 0 * GS:0 * GS + H]
        f_g = s[:, 1 * GS:1 * GS + H]
        g_g = th[:, 2 * GS:2 * GS + H]
        o_g = s[:, 3 * GS:3 * GS + H]
        c_new = f_g * c + i_g * g_g                       # (Bp, H)
        h_small = o_g * jnp.tanh(c_new)                   # (Bp, H)
        if Hp > H:
            h_new = jnp.concatenate([h_small, zero_tail], axis=1)
        else:
            h_new = h_small
        return h_new, c_new

    h0 = jnp.zeros((Bp, Hp), jnp.float32)
    c0 = jnp.zeros((Bp, H), jnp.float32)
    h_last, _ = jax.lax.fori_loop(0, Tc, step, (h0, c0), unroll=unroll)

    # ---- Final Linear on the last timestep's hidden state (fused) ----------
    o_ref[...] = (jnp.dot(h_last.astype(jnp.bfloat16), wfc_ref[...],
                          preferred_element_type=jnp.float32)
                  + bfc_ref[...]).astype(o_ref.dtype)


# ---------------------------------------------------------------------------
# One-time weight prep (hoisted out of the per-call path) + jitted forward.
# ---------------------------------------------------------------------------
class ModelDims(NamedTuple):
    C: int; D: int; K: int; H: int; O: int
    Bp: int; Dp: int; Cp: int; Hp: int; Op: int
    GS: int; Gp: int


def _round_up(x, m):
    return ((x + m - 1) // m) * m


def _pad_to(a, shape):
    pads = [(0, s - d) for d, s in zip(a.shape, shape)]
    return jnp.pad(a, pads)


def _pad_gates(w_t, in_dim, in_pad, h, gs, gp):
    """(in_dim, 4h) -> (in_pad, gp): gate g's weights land in lanes [g*gs, g*gs+h)."""
    out = jnp.zeros((in_pad, gp), w_t.dtype)
    for g in range(4):
        out = out.at[:in_dim, g * gs:g * gs + h].set(w_t[:, g * h:(g + 1) * h])
    return out


def prepare_params(params, batch_size):
    """One-time layout prep: transposes, gate packing, padding, bf16 casts."""
    w_conv = params["conv"]["w"]                      # (C, D, K)
    b_conv = params["conv"]["b"]                      # (C,)
    w_ih = params["lstm"]["w_ih"]                     # (4H, C)
    w_hh = params["lstm"]["w_hh"]                     # (4H, H)
    b_gate = params["lstm"]["b_ih"] + params["lstm"]["b_hh"]   # (4H,) fold OK
    w_fc = params["fc"]["w"]                          # (O, H)
    b_fc = params["fc"]["b"]                          # (O,)

    C, D, K = w_conv.shape
    H = w_hh.shape[1]
    O = w_fc.shape[0]

    Bp = _round_up(max(batch_size, 8), 8)
    Dp = _round_up(D, 128)
    Cp = _round_up(C, 128)
    Hp = _round_up(H, 128)
    Op = _round_up(O, 128)
    if 4 * H <= 128:          # packed gate layout: natural 4H lanes in one vreg
        GS, Gp = H, 128
    else:                     # per-gate padded layout: each gate in its own Hp slot
        GS, Gp = Hp, 4 * Hp

    wconv_p = jnp.stack(
        [_pad_to(w_conv[:, :, k].T, (Dp, Cp)) for k in range(K)], axis=0
    ).astype(jnp.bfloat16)                                           # (K, Dp, Cp)
    bconv_p = _pad_to(b_conv.reshape(1, -1), (1, Cp)).astype(jnp.float32)
    wih_p = _pad_gates(w_ih.T, C, Cp, H, GS, Gp).astype(jnp.bfloat16)    # (Cp, Gp)
    whh_p = _pad_gates(w_hh.T, H, Hp, H, GS, Gp).astype(jnp.bfloat16)    # (Hp, Gp)
    bg_p = _pad_gates(b_gate.reshape(1, -1), 1, 1, H, GS, Gp).astype(jnp.float32)
    wfc_p = _pad_to(w_fc.T, (Hp, Op)).astype(jnp.bfloat16)
    bfc_p = _pad_to(b_fc.reshape(1, -1), (1, Op)).astype(jnp.float32)

    prepped = {"wconv": wconv_p, "bconv": bconv_p, "wih": wih_p, "whh": whh_p,
               "bg": bg_p, "wfc": wfc_p, "bfc": bfc_p}
    dims = ModelDims(C=C, D=D, K=K, H=H, O=O, Bp=Bp, Dp=Dp, Cp=Cp, Hp=Hp,
                     Op=Op, GS=GS, Gp=Gp)
    return prepped, dims


@functools.partial(jax.jit, static_argnums=(2,))
def cnn_lstm_forward(prepped, x, dims):
    """x: (B, T, D) batch_first f32 (as in the PyTorch module). Returns (B, O)."""
    B, T, D = x.shape
    assert D == dims.D and B <= dims.Bp
    K, H, O = dims.K, dims.H, dims.O
    Bp, Dp, Op, Gp = dims.Bp, dims.Dp, dims.Op, dims.Gp
    Tc = T - K + 1

    # Input layout only (weights already prepped): (B,T,D) -> (T*Bp, Dp) bf16.
    x_tbd = jnp.transpose(x, (1, 0, 2))                              # (T, B, D)
    x_p = jnp.pad(x_tbd, ((0, 0), (0, Bp - B), (0, Dp - D))
                  ).reshape(T * Bp, Dp).astype(jnp.bfloat16)

    unroll = Tc if Tc <= 16 else 8                     # bounded unroll for long Tc

    kernel = functools.partial(_cnn_lstm_kernel, H=H, GS=dims.GS, K=K,
                               Bp=Bp, Tc=Tc, unroll=unroll)

    # VMEM budget / cost hints (advisory; sized from the actual buffers).
    operand_bytes = (x_p.size * 2 + prepped["wconv"].size * 2
                     + prepped["wih"].size * 2 + prepped["whh"].size * 2
                     + prepped["wfc"].size * 2
                     + (prepped["bconv"].size + prepped["bg"].size
                        + prepped["bfc"].size + Bp * Op) * 4)
    scratch_bytes = Tc * Bp * Gp * 2
    vmem_limit = int(min(64 * 2**20,
                         max(16 * 2**20, 4 * (operand_bytes + scratch_bytes))))
    flops = (2 * Tc * Bp * (K * Dp * dims.Cp + dims.Cp * Gp + dims.Hp * Gp)
             + 2 * Bp * dims.Hp * Op)
    cost = pl.CostEstimate(flops=flops,
                           transcendentals=Tc * Bp * (2 * Gp + H),
                           bytes_accessed=operand_bytes + scratch_bytes)

    out_p = pl.pallas_call(
        kernel,
        out_shape=jax.ShapeDtypeStruct((Bp, Op), jnp.float32),
        scratch_shapes=[pltpu.VMEM((Tc * Bp, Gp), jnp.bfloat16)],
        compiler_params=pltpu.CompilerParams(vmem_limit_bytes=vmem_limit),
        cost_estimate=cost,
    )(x_p, prepped["wconv"], prepped["bconv"], prepped["wih"], prepped["whh"],
      prepped["bg"], prepped["wfc"], prepped["bfc"])

    return out_p[:B, :O]


# ---------------------------------------------------------------------------
# Parameter init (PyTorch-like shapes) + pure-JAX reference for validation.
# ---------------------------------------------------------------------------
def init_params(key, input_dim, cnn_out_channels, kernel_size, hidden_dim,
                output_dim):
    kc = 1.0 / math.sqrt(input_dim * kernel_size)
    kl = 1.0 / math.sqrt(hidden_dim)
    kf = 1.0 / math.sqrt(hidden_dim)
    ks = jax.random.split(key, 8)
    return {
        "conv": {
            "w": jax.random.uniform(ks[0], (cnn_out_channels, input_dim, kernel_size),
                                    jnp.float32, -kc, kc),
            "b": jax.random.uniform(ks[1], (cnn_out_channels,), jnp.float32, -kc, kc),
        },
        "lstm": {
            "w_ih": jax.random.uniform(ks[2], (4 * hidden_dim, cnn_out_channels),
                                       jnp.float32, -kl, kl),
            "w_hh": jax.random.uniform(ks[3], (4 * hidden_dim, hidden_dim),
                                       jnp.float32, -kl, kl),
            "b_ih": jax.random.uniform(ks[4], (4 * hidden_dim,), jnp.float32, -kl, kl),
            "b_hh": jax.random.uniform(ks[5], (4 * hidden_dim,), jnp.float32, -kl, kl),
        },
        "fc": {
            "w": jax.random.uniform(ks[6], (output_dim, hidden_dim), jnp.float32, -kf, kf),
            "b": jax.random.uniform(ks[7], (output_dim,), jnp.float32, -kf, kf),
        },
    }


def reference_forward(params, x):
    """Pure-JAX (f32) reference of the PyTorch forward."""
    w_conv = params["conv"]["w"]; b_conv = params["conv"]["b"]
    C, D, K = w_conv.shape
    B, T, _ = x.shape
    Tc = T - K + 1
    conv = jnp.zeros((B, Tc, C), jnp.float32)
    for k in range(K):
        conv = conv + x[:, k:k + Tc, :] @ w_conv[:, :, k].T
    conv = jax.nn.relu(conv + b_conv)

    w_ih = params["lstm"]["w_ih"]; w_hh = params["lstm"]["w_hh"]
    b = params["lstm"]["b_ih"] + params["lstm"]["b_hh"]
    H = w_hh.shape[1]
    h = jnp.zeros((B, H), jnp.float32)
    c = jnp.zeros((B, H), jnp.float32)
    for t in range(Tc):
        g = conv[:, t, :] @ w_ih.T + h @ w_hh.T + b
        i_g = jax.nn.sigmoid(g[:, 0 * H:1 * H])
        f_g = jax.nn.sigmoid(g[:, 1 * H:2 * H])
        g_g = jnp.tanh(g[:, 2 * H:3 * H])
        o_g = jax.nn.sigmoid(g[:, 3 * H:4 * H])
        c = f_g * c + i_g * g_g
        h = o_g * jnp.tanh(c)
    return h @ params["fc"]["w"].T + params["fc"]["b"]


if __name__ == "__main__":
    # Small deterministic config consistent with the module:
    # batch=2, seq=16, input_dim=8, cnn_out_channels=16, kernel=3, hidden=32, out=8
    B, T, D = 2, 16, 8
    C, K = 16, 3
    H, O = 32, 8

    key = jax.random.PRNGKey(0)
    key, kx, kp = jax.random.split(key, 3)
    x = jax.random.normal(kx, (B, T, D), dtype=jnp.float32)
    params = init_params(kp, D, C, K, H, O)

    prepped, dims = prepare_params(params, batch_size=B)   # one-time weight prep
    out = cnn_lstm_forward(prepped, x, dims)
    jax.block_until_ready(out)
    assert out.shape == (B, O), out.shape

    # Silent correctness check vs pure-JAX f32 reference (bf16-matmul tolerance).
    ref = reference_forward(params, x)
    assert jnp.allclose(out, ref, rtol=5e-2, atol=5e-2)

    print("KERNEL_OK")
</pallas_src>

<mosaic_0001>
module attributes {stable_mosaic.version = 11 : i64} {
  func.func @_cnn_lstm_kernel(%arg0: memref<128x128xbf16, #tpu.memory_space<vmem>>, %arg1: memref<3x128x128xbf16, #tpu.memory_space<vmem>>, %arg2: memref<1x128xf32, #tpu.memory_space<vmem>>, %arg3: memref<128x128xbf16, #tpu.memory_space<vmem>>, %arg4: memref<128x128xbf16, #tpu.memory_space<vmem>>, %arg5: memref<1x128xf32, #tpu.memory_space<vmem>>, %arg6: memref<128x128xbf16, #tpu.memory_space<vmem>>, %arg7: memref<1x128xf32, #tpu.memory_space<vmem>>, %arg8: memref<8x128xf32, #tpu.memory_space<vmem>>, %arg9: memref<112x128xbf16, #tpu.memory_space<vmem>>) attributes {dimension_semantics = [], scalar_prefetch = 0 : i64, scratch_operands = 1 : i64, tpu.core_type = #tpu.core_type<tc>} {
    %cst = arith.constant 0.000000e+00 : f32
    %0 = vector.broadcast %cst : f32 to vector<112x128xf32>
    %c0 = arith.constant 0 : index
    %c0_0 = arith.constant 0 : index
    %1 = vector.load %arg0[%c0, %c0_0] : memref<128x128xbf16, #tpu.memory_space<vmem>>, vector<112x128xbf16>
    %c0_1 = arith.constant 0 : index
    %c0_2 = arith.constant 0 : index
    %c0_3 = arith.constant 0 : index
    %2 = vector.load %arg1[%c0_1, %c0_2, %c0_3] : memref<3x128x128xbf16, #tpu.memory_space<vmem>>, vector<1x128x128xbf16>
    %3 = vector.shape_cast %2 : vector<1x128x128xbf16> to vector<128x128xbf16>
    %cst_4 = arith.constant dense<0.000000e+00> : vector<112x128xf32>
    %4 = tpu.matmul %1, %3, %cst_4 {dimension_numbers = #tpu.dot_dimension_numbers<[1], [0], [0], [1], [0, 0, 1, 1], [], []>} : vector<112x128xbf16>, vector<128x128xbf16>, vector<112x128xf32> -> vector<112x128xf32>
    %5 = arith.addf %0, %4 : vector<112x128xf32>
    %c8 = arith.constant 8 : index
    %c0_5 = arith.constant 0 : index
    %6 = vector.load %arg0[%c8, %c0_5] : memref<128x128xbf16, #tpu.memory_space<vmem>>, vector<112x128xbf16>
    %c1 = arith.constant 1 : index
    %c0_6 = arith.constant 0 : index
    %c0_7 = arith.constant 0 : index
    %7 = vector.load %arg1[%c1, %c0_6, %c0_7] : memref<3x128x128xbf16, #tpu.memory_space<vmem>>, vector<1x128x128xbf16>
    %8 = vector.shape_cast %7 : vector<1x128x128xbf16> to vector<128x128xbf16>
    %cst_8 = arith.constant dense<0.000000e+00> : vector<112x128xf32>
    %9 = tpu.matmul %6, %8, %cst_8 {dimension_numbers = #tpu.dot_dimension_numbers<[1], [0], [0], [1], [0, 0, 1, 1], [], []>} : vector<112x128xbf16>, vector<128x128xbf16>, vector<112x128xf32> -> vector<112x128xf32>
    %10 = arith.addf %5, %9 : vector<112x128xf32>
    %c16 = arith.constant 16 : index
    %c0_9 = arith.constant 0 : index
    %11 = vector.load %arg0[%c16, %c0_9] : memref<128x128xbf16, #tpu.memory_space<vmem>>, vector<112x128xbf16>
    %c2 = arith.constant 2 : index
    %c0_10 = arith.constant 0 : index
    %c0_11 = arith.constant 0 : index
    %12 = vector.load %arg1[%c2, %c0_10, %c0_11] : memref<3x128x128xbf16, #tpu.memory_space<vmem>>, vector<1x128x128xbf16>
    %13 = vector.shape_cast %12 : vector<1x128x128xbf16> to vector<128x128xbf16>
    %cst_12 = arith.constant dense<0.000000e+00> : vector<112x128xf32>
    %14 = tpu.matmul %11, %13, %cst_12 {dimension_numbers = #tpu.dot_dimension_numbers<[1], [0], [0], [1], [0, 0, 1, 1], [], []>} : vector<112x128xbf16>, vector<128x128xbf16>, vector<112x128xf32> -> vector<112x128xf32>
    %15 = arith.addf %10, %14 : vector<112x128xf32>
    %c0_13 = arith.constant 0 : index
    %c0_14 = arith.constant 0 : index
    %16 = vector.load %arg2[%c0_13, %c0_14] : memref<1x128xf32, #tpu.memory_space<vmem>>, vector<1x128xf32>
    %17 = vector.broadcast %16 : vector<1x128xf32> to vector<112x128xf32>
    %18 = arith.addf %15, %17 : vector<112x128xf32>
    %cst_15 = arith.constant 0.000000e+00 : f32
    %19 = vector.broadcast %cst_15 : f32 to vector<112x128xf32>
    %20 = arith.maximumf %18, %19 : vector<112x128xf32>
    %21 = arith.truncf %20 : vector<112x128xf32> to vector<112x128xbf16>
    %c0_16 = arith.constant 0 : index
    %c0_17 = arith.constant 0 : index
    %22 = vector.load %arg3[%c0_16, %c0_17] : memref<128x128xbf16, #tpu.memory_space<vmem>>, vector<128x128xbf16>
    %cst_18 = arith.constant dense<0.000000e+00> : vector<112x128xf32>
    %23 = tpu.matmul %21, %22, %cst_18 {dimension_numbers = #tpu.dot_dimension_numbers<[1], [0], [0], [1], [0, 0, 1, 1], [], []>} : vector<112x128xbf16>, vector<128x128xbf16>, vector<112x128xf32> -> vector<112x128xf32>
    %24 = arith.truncf %23 : vector<112x128xf32> to vector<112x128xbf16>
    %c0_19 = arith.constant 0 : index
    %c0_20 = arith.constant 0 : index
    %25 = vector.load %arg9[%c0_19, %c0_20] : memref<112x128xbf16, #tpu.memory_space<vmem>>, vector<112x128xbf16>
    tpu.vector_store %arg9[%c0_19, %c0_20], %24 {strides = array<i32>} : memref<112x128xbf16, #tpu.memory_space<vmem>>, vector<112x128xbf16>,
    %c0_21 = arith.constant 0 : index
    %c0_22 = arith.constant 0 : index
    %26 = vector.load %arg5[%c0_21, %c0_22] : memref<1x128xf32, #tpu.memory_space<vmem>>, vector<1x128xf32>
    %cst_23 = arith.constant 0.000000e+00 : f32
    %27 = vector.broadcast %cst_23 : f32 to vector<8x96xf32>
    %cst_24 = arith.constant 0.000000e+00 : f32
    %28 = vector.broadcast %cst_24 : f32 to vector<8x128xf32>
    %cst_25 = arith.constant 0.000000e+00 : f32
    %29 = vector.broadcast %cst_25 : f32 to vector<8x32xf32>
    %c0_i32 = arith.constant 0 : i32
    %30 = arith.truncf %28 : vector<8x128xf32> to vector<8x128xbf16>
    %c0_26 = arith.constant 0 : index
    %c0_27 = arith.constant 0 : index
    %31 = vector.load %arg4[%c0_26, %c0_27] : memref<128x128xbf16, #tpu.memory_space<vmem>>, vector<128x128xbf16>
    %cst_28 = arith.constant dense<0.000000e+00> : vector<8x128xf32>
    %32 = tpu.matmul %30, %31, %cst_28 {dimension_numbers = #tpu.dot_dimension_numbers<[1], [0], [0], [1], [0, 0, 1, 1], [], []>} : vector<8x128xbf16>, vector<128x128xbf16>, vector<8x128xf32> -> vector<8x128xf32>
    %c8_i32 = arith.constant 8 : i32
    %33 = arith.muli %c0_i32, %c8_i32 : i32
    %34 = tpu.assume_multiple %33, 8 : i32
    %35 = arith.index_cast %34 : i32 to index
    %c0_29 = arith.constant 0 : index
    %36 = vector.load %arg9[%35, %c0_29] : memref<112x128xbf16, #tpu.memory_space<vmem>>, vector<8x128xbf16>
    %37 = arith.extf %36 : vector<8x128xbf16> to vector<8x128xf32>
    %38 = vector.broadcast %26 : vector<1x128xf32> to vector<8x128xf32>
    %39 = arith.addf %37, %38 : vector<8x128xf32>
    %40 = arith.addf %39, %32 : vector<8x128xf32>
    %41 = arith.negf %40 : vector<8x128xf32>
    %42 = math.exp %41 : vector<8x128xf32>
    %cst_30 = arith.constant 1.000000e+00 : f32
    %43 = vector.broadcast %cst_30 : f32 to vector<8x128xf32>
    %44 = arith.addf %43, %42 : vector<8x128xf32>
    %45 = arith.divf %43, %44 : vector<8x128xf32>
    %46 = math.tanh %40 : vector<8x128xf32>
    %47 = vector.extract_strided_slice %45 {offsets = [0, 0], sizes = [8, 32], strides = [1, 1]} : vector<8x128xf32> to vector<8x32xf32>
    %48 = vector.extract_strided_slice %45 {offsets = [0, 32], sizes = [8, 32], strides = [1, 1]} : vector<8x128xf32> to vector<8x32xf32>
    %49 = vector.extract_strided_slice %46 {offsets = [0, 64], sizes = [8, 32], strides = [1, 1]} : vector<8x128xf32> to vector<8x32xf32>
    %50 = vector.extract_strided_slice %45 {offsets = [0, 96], sizes = [8, 32], strides = [1, 1]} : vector<8x128xf32> to vector<8x32xf32>
    %51 = arith.mulf %48, %29 : vector<8x32xf32>
    %52 = arith.mulf %47, %49 : vector<8x32xf32>
    %53 = arith.addf %51, %52 : vector<8x32xf32>
    %54 = math.tanh %53 : vector<8x32xf32>
    %55 = arith.mulf %50, %54 : vector<8x32xf32>
    %56 = tpu.concatenate %55, %27 in 1 : vector<8x32xf32>, vector<8x96xf32> -> vector<8x128xf32>
    %c1_i32 = arith.constant 1 : i32
    %57 = arith.truncf %56 : vector<8x128xf32> to vector<8x128xbf16>
    %c0_31 = arith.constant 0 : index
    %c0_32 = arith.constant 0 : index
    %58 = vector.load %arg4[%c0_31, %c0_32] : memref<128x128xbf16, #tpu.memory_space<vmem>>, vector<128x128xbf16>
    %cst_33 = arith.constant dense<0.000000e+00> : vector<8x128xf32>
    %59 = tpu.matmul %57, %58, %cst_33 {dimension_numbers = #tpu.dot_dimension_numbers<[1], [0], [0], [1], [0, 0, 1, 1], [], []>} : vector<8x128xbf16>, vector<128x128xbf16>, vector<8x128xf32> -> vector<8x128xf32>
    %c8_i32_34 = arith.constant 8 : i32
    %60 = arith.muli %c1_i32, %c8_i32_34 : i32
    %61 = tpu.assume_multiple %60, 8 : i32
    %62 = arith.index_cast %61 : i32 to index
    %c0_35 = arith.constant 0 : index
    %63 = vector.load %arg9[%62, %c0_35] : memref<112x128xbf16, #tpu.memory_space<vmem>>, vector<8x128xbf16>
    %64 = arith.extf %63 : vector<8x128xbf16> to vector<8x128xf32>
    %65 = vector.broadcast %26 : vector<1x128xf32> to vector<8x128xf32>
    %66 = arith.addf %64, %65 : vector<8x128xf32>
    %67 = arith.addf %66, %59 : vector<8x128xf32>
    %68 = arith.negf %67 : vector<8x128xf32>
    %69 = math.exp %68 : vector<8x128xf32>
    %cst_36 = arith.constant 1.000000e+00 : f32
    %70 = vector.broadcast %cst_36 : f32 to vector<8x128xf32>
    %71 = arith.addf %70, %69 : vector<8x128xf32>
    %72 = arith.divf %70, %71 : vector<8x128xf32>
    %73 = math.tanh %67 : vector<8x128xf32>
    %74 = vector.extract_strided_slice %72 {offsets = [0, 0], sizes = [8, 32], strides = [1, 1]} : vector<8x128xf32> to vector<8x32xf32>
    %75 = vector.extract_strided_slice %72 {offsets = [0, 32], sizes = [8, 32], strides = [1, 1]} : vector<8x128xf32> to vector<8x32xf32>
    %76 = vector.extract_strided_slice %73 {offsets = [0, 64], sizes = [8, 32], strides = [1, 1]} : vector<8x128xf32> to vector<8x32xf32>
    %77 = vector.extract_strided_slice %72 {offsets = [0, 96], sizes = [8, 32], strides = [1, 1]} : vector<8x128xf32> to vector<8x32xf32>
    %78 = arith.mulf %75, %53 : vector<8x32xf32>
    %79 = arith.mulf %74, %76 : vector<8x32xf32>
    %80 = arith.addf %78, %79 : vector<8x32xf32>
    %81 = math.tanh %80 : vector<8x32xf32>
    %82 = arith.mulf %77, %81 : vector<8x32xf32>
    %83 = tpu.concatenate %82, %27 in 1 : vector<8x32xf32>, vector<8x96xf32> -> vector<8x128xf32>
    %c2_i32 = arith.constant 2 : i32
    %84 = arith.truncf %83 : vector<8x128xf32> to vector<8x128xbf16>
    %c0_37 = arith.constant 0 : index
    %c0_38 = arith.constant 0 : index
    %85 = vector.load %arg4[%c0_37, %c0_38] : memref<128x128xbf16, #tpu.memory_space<vmem>>, vector<128x128xbf16>
    %cst_39 = arith.constant dense<0.000000e+00> : vector<8x128xf32>
    %86 = tpu.matmul %84, %85, %cst_39 {dimension_numbers = #tpu.dot_dimension_numbers<[1], [0], [0], [1], [0, 0, 1, 1], [], []>} : vector<8x128xbf16>, vector<128x128xbf16>, vector<8x128xf32> -> vector<8x128xf32>
    %c8_i32_40 = arith.constant 8 : i32
    %87 = arith.muli %c2_i32, %c8_i32_40 : i32
    %88 = tpu.assume_multiple %87, 8 : i32
    %89 = arith.index_cast %88 : i32 to index
    %c0_41 = arith.constant 0 : index
    %90 = vector.load %arg9[%89, %c0_41] : memref<112x128xbf16, #tpu.memory_space<vmem>>, vector<8x128xbf16>
    %91 = arith.extf %90 : vector<8x128xbf16> to vector<8x128xf32>
    %92 = vector.broadcast %26 : vector<1x128xf32> to vector<8x128xf32>
    %93 = arith.addf %91, %92 : vector<8x128xf32>
    %94 = arith.addf %93, %86 : vector<8x128xf32>
    %95 = arith.negf %94 : vector<8x128xf32>
    %96 = math.exp %95 : vector<8x128xf32>
    %cst_42 = arith.constant 1.000000e+00 : f32
    %97 = vector.broadcast %cst_42 : f32 to vector<8x128xf32>
    %98 = arith.addf %97, %96 : vector<8x128xf32>
    %99 = arith.divf %97, %98 : vector<8x128xf32>
    %100 = math.tanh %94 : vector<8x128xf32>
    %101 = vector.extract_strided_slice %99 {offsets = [0, 0], sizes = [8, 32], strides = [1, 1]} : vector<8x128xf32> to vector<8x32xf32>
    %102 = vector.extract_strided_slice %99 {offsets = [0, 32], sizes = [8, 32], strides = [1, 1]} : vector<8x128xf32> to vector<8x32xf32>
    %103 = vector.extract_strided_slice %100 {offsets = [0, 64], sizes = [8, 32], strides = [1, 1]} : vector<8x128xf32> to vector<8x32xf32>
    %104 = vector.extract_strided_slice %99 {offsets = [0, 96], sizes = [8, 32], strides = [1, 1]} : vector<8x128xf32> to vector<8x32xf32>
    %105 = arith.mulf %102, %80 : vector<8x32xf32>
    %106 = arith.mulf %101, %103 : vector<8x32xf32>
    %107 = arith.addf %105, %106 : vector<8x32xf32>
    %108 = math.tanh %107 : vector<8x32xf32>
    %109 = arith.mulf %104, %108 : vector<8x32xf32>
    %110 = tpu.concatenate %109, %27 in 1 : vector<8x32xf32>, vector<8x96xf32> -> vector<8x128xf32>
    %c3_i32 = arith.constant 3 : i32
    %111 = arith.truncf %110 : vector<8x128xf32> to vector<8x128xbf16>
    %c0_43 = arith.constant 0 : index
    %c0_44 = arith.constant 0 : index
    %112 = vector.load %arg4[%c0_43, %c0_44] : memref<128x128xbf16, #tpu.memory_space<vmem>>, vector<128x128xbf16>
    %cst_45 = arith.constant dense<0.000000e+00> : vector<8x128xf32>
    %113 = tpu.matmul %111, %112, %cst_45 {dimension_numbers = #tpu.dot_dimension_numbers<[1], [0], [0], [1], [0, 0, 1, 1], [], []>} : vector<8x128xbf16>, vector<128x128xbf16>, vector<8x128xf32> -> vector<8x128xf32>
    %c8_i32_46 = arith.constant 8 : i32
    %114 = arith.muli %c3_i32, %c8_i32_46 : i32
    %115 = tpu.assume_multiple %114, 8 : i32
    %116 = arith.index_cast %115 : i32 to index
    %c0_47 = arith.constant 0 : index
    %117 = vector.load %arg9[%116, %c0_47] : memref<112x128xbf16, #tpu.memory_space<vmem>>, vector<8x128xbf16>
    %118 = arith.extf %117 : vector<8x128xbf16> to vector<8x128xf32>
    %119 = vector.broadcast %26 : vector<1x128xf32> to vector<8x128xf32>
    %120 = arith.addf %118, %119 : vector<8x128xf32>
    %121 = arith.addf %120, %113 : vector<8x128xf32>
    %122 = arith.negf %121 : vector<8x128xf32>
    %123 = math.exp %122 : vector<8x128xf32>
    %cst_48 = arith.constant 1.000000e+00 : f32
    %124 = vector.broadcast %cst_48 : f32 to vector<8x128xf32>
    %125 = arith.addf %124, %123 : vector<8x128xf32>
    %126 = arith.divf %124, %125 : vector<8x128xf32>
    %127 = math.tanh %121 : vector<8x128xf32>
    %128 = vector.extract_strided_slice %126 {offsets = [0, 0], sizes = [8, 32], strides = [1, 1]} : vector<8x128xf32> to vector<8x32xf32>
    %129 = vector.extract_strided_slice %126 {offsets = [0, 32], sizes = [8, 32], strides = [1, 1]} : vector<8x128xf32> to vector<8x32xf32>
    %130 = vector.extract_strided_slice %127 {offsets = [0, 64], sizes = [8, 32], strides = [1, 1]} : vector<8x128xf32> to vector<8x32xf32>
    %131 = vector.extract_strided_slice %126 {offsets = [0, 96], sizes = [8, 32], strides = [1, 1]} : vector<8x128xf32> to vector<8x32xf32>
    %132 = arith.mulf %129, %107 : vector<8x32xf32>
    %133 = arith.mulf %128, %130 : vector<8x32xf32>
    %134 = arith.addf %132, %133 : vector<8x32xf32>
    %135 = math.tanh %134 : vector<8x32xf32>
    %136 = arith.mulf %131, %135 : vector<8x32xf32>
    %137 = tpu.concatenate %136, %27 in 1 : vector<8x32xf32>, vector<8x96xf32> -> vector<8x128xf32>
    %c4_i32 = arith.constant 4 : i32
    %138 = arith.truncf %137 : vector<8x128xf32> to vector<8x128xbf16>
    %c0_49 = arith.constant 0 : index
    %c0_50 = arith.constant 0 : index
    %139 = vector.load %arg4[%c0_49, %c0_50] : memref<128x128xbf16, #tpu.memory_space<vmem>>, vector<128x128xbf16>
    %cst_51 = arith.constant dense<0.000000e+00> : vector<8x128xf32>
    %140 = tpu.matmul %138, %139, %cst_51 {dimension_numbers = #tpu.dot_dimension_numbers<[1], [0], [0], [1], [0, 0, 1, 1], [], []>} : vector<8x128xbf16>, vector<128x128xbf16>, vector<8x128xf32> -> vector<8x128xf32>
    %c8_i32_52 = arith.constant 8 : i32
    %141 = arith.muli %c4_i32, %c8_i32_52 : i32
    %142 = tpu.assume_multiple %141, 8 : i32
    %143 = arith.index_cast %142 : i32 to index
    %c0_53 = arith.constant 0 : index
    %144 = vector.load %arg9[%143, %c0_53] : memref<112x128xbf16, #tpu.memory_space<vmem>>, vector<8x128xbf16>
    %145 = arith.extf %144 : vector<8x128xbf16> to vector<8x128xf32>
    %146 = vector.broadcast %26 : vector<1x128xf32> to vector<8x128xf32>
    %147 = arith.addf %145, %146 : vector<8x128xf32>
    %148 = arith.addf %147, %140 : vector<8x128xf32>
    %149 = arith.negf %148 : vector<8x128xf32>
    %150 = math.exp %149 : vector<8x128xf32>
    %cst_54 = arith.constant 1.000000e+00 : f32
    %151 = vector.broadcast %cst_54 : f32 to vector<8x128xf32>
    %152 = arith.addf %151, %150 : vector<8x128xf32>
    %153 = arith.divf %151, %152 : vector<8x128xf32>
    %154 = math.tanh %148 : vector<8x128xf32>
    %155 = vector.extract_strided_slice %153 {offsets = [0, 0], sizes = [8, 32], strides = [1, 1]} : vector<8x128xf32> to vector<8x32xf32>
    %156 = vector.extract_strided_slice %153 {offsets = [0, 32], sizes = [8, 32], strides = [1, 1]} : vector<8x128xf32> to vector<8x32xf32>
    %157 = vector.extract_strided_slice %154 {offsets = [0, 64], sizes = [8, 32], strides = [1, 1]} : vector<8x128xf32> to vector<8x32xf32>
    %158 = vector.extract_strided_slice %153 {offsets = [0, 96], sizes = [8, 32], strides = [1, 1]} : vector<8x128xf32> to vector<8x32xf32>
    %159 = arith.mulf %156, %134 : vector<8x32xf32>
    %160 = arith.mulf %155, %157 : vector<8x32xf32>
    %161 = arith.addf %159, %160 : vector<8x32xf32>
    %162 = math.tanh %161 : vector<8x32xf32>
    %163 = arith.mulf %158, %162 : vector<8x32xf32>
    %164 = tpu.concatenate %163, %27 in 1 : vector<8x32xf32>, vector<8x96xf32> -> vector<8x128xf32>
    %c5_i32 = arith.constant 5 : i32
    %165 = arith.truncf %164 : vector<8x128xf32> to vector<8x128xbf16>
    %c0_55 = arith.constant 0 : index
    %c0_56 = arith.constant 0 : index
    %166 = vector.load %arg4[%c0_55, %c0_56] : memref<128x128xbf16, #tpu.memory_space<vmem>>, vector<128x128xbf16>
    %cst_57 = arith.constant dense<0.000000e+00> : vector<8x128xf32>
    %167 = tpu.matmul %165, %166, %cst_57 {dimension_numbers = #tpu.dot_dimension_numbers<[1], [0], [0], [1], [0, 0, 1, 1], [], []>} : vector<8x128xbf16>, vector<128x128xbf16>, vector<8x128xf32> -> vector<8x128xf32>
    %c8_i32_58 = arith.constant 8 : i32
    %168 = arith.muli %c5_i32, %c8_i32_58 : i32
    %169 = tpu.assume_multiple %168, 8 : i32
    %170 = arith.index_cast %169 : i32 to index
    %c0_59 = arith.constant 0 : index
    %171 = vector.load %arg9[%170, %c0_59] : memref<112x128xbf16, #tpu.memory_space<vmem>>, vector<8x128xbf16>
    %172 = arith.extf %171 : vector<8x128xbf16> to vector<8x128xf32>
    %173 = vector.broadcast %26 : vector<1x128xf32> to vector<8x128xf32>
    %174 = arith.addf %172, %173 : vector<8x128xf32>
    %175 = arith.addf %174, %167 : vector<8x128xf32>
    %176 = arith.negf %175 : vector<8x128xf32>
    %177 = math.exp %176 : vector<8x128xf32>
    %cst_60 = arith.constant 1.000000e+00 : f32
    %178 = vector.broadcast %cst_60 : f32 to vector<8x128xf32>
    %179 = arith.addf %178, %177 : vector<8x128xf32>
    %180 = arith.divf %178, %179 : vector<8x128xf32>
    %181 = math.tanh %175 : vector<8x128xf32>
    %182 = vector.extract_strided_slice %180 {offsets = [0, 0], sizes = [8, 32], strides = [1, 1]} : vector<8x128xf32> to vector<8x32xf32>
    %183 = vector.extract_strided_slice %180 {offsets = [0, 32], sizes = [8, 32], strides = [1, 1]} : vector<8x128xf32> to vector<8x32xf32>
    %184 = vector.extract_strided_slice %181 {offsets = [0, 64], sizes = [8, 32], strides = [1, 1]} : vector<8x128xf32> to vector<8x32xf32>
    %185 = vector.extract_strided_slice %180 {offsets = [0, 96], sizes = [8, 32], strides = [1, 1]} : vector<8x128xf32> to vector<8x32xf32>
    %186 = arith.mulf %183, %161 : vector<8x32xf32>
    %187 = arith.mulf %182, %184 : vector<8x32xf32>
    %188 = arith.addf %186, %187 : vector<8x32xf32>
    %189 = math.tanh %188 : vector<8x32xf32>
    %190 = arith.mulf %185, %189 : vector<8x32xf32>
    %191 = tpu.concatenate %190, %27 in 1 : vector<8x32xf32>, vector<8x96xf32> -> vector<8x128xf32>
    %c6_i32 = arith.constant 6 : i32
    %192 = arith.truncf %191 : vector<8x128xf32> to vector<8x128xbf16>
    %c0_61 = arith.constant 0 : index
    %c0_62 = arith.constant 0 : index
    %193 = vector.load %arg4[%c0_61, %c0_62] : memref<128x128xbf16, #tpu.memory_space<vmem>>, vector<128x128xbf16>
    %cst_63 = arith.constant dense<0.000000e+00> : vector<8x128xf32>
    %194 = tpu.matmul %192, %193, %cst_63 {dimension_numbers = #tpu.dot_dimension_numbers<[1], [0], [0], [1], [0, 0, 1, 1], [], []>} : vector<8x128xbf16>, vector<128x128xbf16>, vector<8x128xf32> -> vector<8x128xf32>
    %c8_i32_64 = arith.constant 8 : i32
    %195 = arith.muli %c6_i32, %c8_i32_64 : i32
    %196 = tpu.assume_multiple %195, 8 : i32
    %197 = arith.index_cast %196 : i32 to index
    %c0_65 = arith.constant 0 : index
    %198 = vector.load %arg9[%197, %c0_65] : memref<112x128xbf16, #tpu.memory_space<vmem>>, vector<8x128xbf16>
    %199 = arith.extf %198 : vector<8x128xbf16> to vector<8x128xf32>
    %200 = vector.broadcast %26 : vector<1x128xf32> to vector<8x128xf32>
    %201 = arith.addf %199, %200 : vector<8x128xf32>
    %202 = arith.addf %201, %194 : vector<8x128xf32>
    %203 = arith.negf %202 : vector<8x128xf32>
    %204 = math.exp %203 : vector<8x128xf32>
    %cst_66 = arith.constant 1.000000e+00 : f32
    %205 = vector.broadcast %cst_66 : f32 to vector<8x128xf32>
    %206 = arith.addf %205, %204 : vector<8x128xf32>
    %207 = arith.divf %205, %206 : vector<8x128xf32>
    %208 = math.tanh %202 : vector<8x128xf32>
    %209 = vector.extract_strided_slice %207 {offsets = [0, 0], sizes = [8, 32], strides = [1, 1]} : vector<8x128xf32> to vector<8x32xf32>
    %210 = vector.extract_strided_slice %207 {offsets = [0, 32], sizes = [8, 32], strides = [1, 1]} : vector<8x128xf32> to vector<8x32xf32>
    %211 = vector.extract_strided_slice %208 {offsets = [0, 64], sizes = [8, 32], strides = [1, 1]} : vector<8x128xf32> to vector<8x32xf32>
    %212 = vector.extract_strided_slice %207 {offsets = [0, 96], sizes = [8, 32], strides = [1, 1]} : vector<8x128xf32> to vector<8x32xf32>
    %213 = arith.mulf %210, %188 : vector<8x32xf32>
    %214 = arith.mulf %209, %211 : vector<8x32xf32>
    %215 = arith.addf %213, %214 : vector<8x32xf32>
    %216 = math.tanh %215 : vector<8x32xf32>
    %217 = arith.mulf %212, %216 : vector<8x32xf32>
    %218 = tpu.concatenate %217, %27 in 1 : vector<8x32xf32>, vector<8x96xf32> -> vector<8x128xf32>
    %c7_i32 = arith.constant 7 : i32
    %219 = arith.truncf %218 : vector<8x128xf32> to vector<8x128xbf16>
    %c0_67 = arith.constant 0 : index
    %c0_68 = arith.constant 0 : index
    %220 = vector.load %arg4[%c0_67, %c0_68] : memref<128x128xbf16, #tpu.memory_space<vmem>>, vector<128x128xbf16>
    %cst_69 = arith.constant dense<0.000000e+00> : vector<8x128xf32>
    %221 = tpu.matmul %219, %220, %cst_69 {dimension_numbers = #tpu.dot_dimension_numbers<[1], [0], [0], [1], [0, 0, 1, 1], [], []>} : vector<8x128xbf16>, vector<128x128xbf16>, vector<8x128xf32> -> vector<8x128xf32>
    %c8_i32_70 = arith.constant 8 : i32
    %222 = arith.muli %c7_i32, %c8_i32_70 : i32
    %223 = tpu.assume_multiple %222, 8 : i32
    %224 = arith.index_cast %223 : i32 to index
    %c0_71 = arith.constant 0 : index
    %225 = vector.load %arg9[%224, %c0_71] : memref<112x128xbf16, #tpu.memory_space<vmem>>, vector<8x128xbf16>
    %226 = arith.extf %225 : vector<8x128xbf16> to vector<8x128xf32>
    %227 = vector.broadcast %26 : vector<1x128xf32> to vector<8x128xf32>
    %228 = arith.addf %226, %227 : vector<8x128xf32>
    %229 = arith.addf %228, %221 : vector<8x128xf32>
    %230 = arith.negf %229 : vector<8x128xf32>
    %231 = math.exp %230 : vector<8x128xf32>
    %cst_72 = arith.constant 1.000000e+00 : f32
    %232 = vector.broadcast %cst_72 : f32 to vector<8x128xf32>
    %233 = arith.addf %232, %231 : vector<8x128xf32>
    %234 = arith.divf %232, %233 : vector<8x128xf32>
    %235 = math.tanh %229 : vector<8x128xf32>
    %236 = vector.extract_strided_slice %234 {offsets = [0, 0], sizes = [8, 32], strides = [1, 1]} : vector<8x128xf32> to vector<8x32xf32>
    %237 = vector.extract_strided_slice %234 {offsets = [0, 32], sizes = [8, 32], strides = [1, 1]} : vector<8x128xf32> to vector<8x32xf32>
    %238 = vector.extract_strided_slice %235 {offsets = [0, 64], sizes = [8, 32], strides = [1, 1]} : vector<8x128xf32> to vector<8x32xf32>
    %239 = vector.extract_strided_slice %234 {offsets = [0, 96], sizes = [8, 32], strides = [1, 1]} : vector<8x128xf32> to vector<8x32xf32>
    %240 = arith.mulf %237, %215 : vector<8x32xf32>
    %241 = arith.mulf %236, %238 : vector<8x32xf32>
    %242 = arith.addf %240, %241 : vector<8x32xf32>
    %243 = math.tanh %242 : vector<8x32xf32>
    %244 = arith.mulf %239, %243 : vector<8x32xf32>
    %245 = tpu.concatenate %244, %27 in 1 : vector<8x32xf32>, vector<8x96xf32> -> vector<8x128xf32>
    %c8_i32_73 = arith.constant 8 : i32
    %246 = arith.truncf %245 : vector<8x128xf32> to vector<8x128xbf16>
    %c0_74 = arith.constant 0 : index
    %c0_75 = arith.constant 0 : index
    %247 = vector.load %arg4[%c0_74, %c0_75] : memref<128x128xbf16, #tpu.memory_space<vmem>>, vector<128x128xbf16>
    %cst_76 = arith.constant dense<0.000000e+00> : vector<8x128xf32>
    %248 = tpu.matmul %246, %247, %cst_76 {dimension_numbers = #tpu.dot_dimension_numbers<[1], [0], [0], [1], [0, 0, 1, 1], [], []>} : vector<8x128xbf16>, vector<128x128xbf16>, vector<8x128xf32> -> vector<8x128xf32>
    %c8_i32_77 = arith.constant 8 : i32
    %249 = arith.muli %c8_i32_73, %c8_i32_77 : i32
    %250 = tpu.assume_multiple %249, 8 : i32
    %251 = arith.index_cast %250 : i32 to index
    %c0_78 = arith.constant 0 : index
    %252 = vector.load %arg9[%251, %c0_78] : memref<112x128xbf16, #tpu.memory_space<vmem>>, vector<8x128xbf16>
    %253 = arith.extf %252 : vector<8x128xbf16> to vector<8x128xf32>
    %254 = vector.broadcast %26 : vector<1x128xf32> to vector<8x128xf32>
    %255 = arith.addf %253, %254 : vector<8x128xf32>
    %256 = arith.addf %255, %248 : vector<8x128xf32>
    %257 = arith.negf %256 : vector<8x128xf32>
    %258 = math.exp %257 : vector<8x128xf32>
    %cst_79 = arith.constant 1.000000e+00 : f32
    %259 = vector.broadcast %cst_79 : f32 to vector<8x128xf32>
    %260 = arith.addf %259, %258 : vector<8x128xf32>
    %261 = arith.divf %259, %260 : vector<8x128xf32>
    %262 = math.tanh %256 : vector<8x128xf32>
    %263 = vector.extract_strided_slice %261 {offsets = [0, 0], sizes = [8, 32], strides = [1, 1]} : vector<8x128xf32> to vector<8x32xf32>
    %264 = vector.extract_strided_slice %261 {offsets = [0, 32], sizes = [8, 32], strides = [1, 1]} : vector<8x128xf32> to vector<8x32xf32>
    %265 = vector.extract_strided_slice %262 {offsets = [0, 64], sizes = [8, 32], strides = [1, 1]} : vector<8x128xf32> to vector<8x32xf32>
    %266 = vector.extract_strided_slice %261 {offsets = [0, 96], sizes = [8, 32], strides = [1, 1]} : vector<8x128xf32> to vector<8x32xf32>
    %267 = arith.mulf %264, %242 : vector<8x32xf32>
    %268 = arith.mulf %263, %265 : vector<8x32xf32>
    %269 = arith.addf %267, %268 : vector<8x32xf32>
    %270 = math.tanh %269 : vector<8x32xf32>
    %271 = arith.mulf %266, %270 : vector<8x32xf32>
    %272 = tpu.concatenate %271, %27 in 1 : vector<8x32xf32>, vector<8x96xf32> -> vector<8x128xf32>
    %c9_i32 = arith.constant 9 : i32
    %273 = arith.truncf %272 : vector<8x128xf32> to vector<8x128xbf16>
    %c0_80 = arith.constant 0 : index
    %c0_81 = arith.constant 0 : index
    %274 = vector.load %arg4[%c0_80, %c0_81] : memref<128x128xbf16, #tpu.memory_space<vmem>>, vector<128x128xbf16>
    %cst_82 = arith.constant dense<0.000000e+00> : vector<8x128xf32>
    %275 = tpu.matmul %273, %274, %cst_82 {dimension_numbers = #tpu.dot_dimension_numbers<[1], [0], [0], [1], [0, 0, 1, 1], [], []>} : vector<8x128xbf16>, vector<128x128xbf16>, vector<8x128xf32> -> vector<8x128xf32>
    %c8_i32_83 = arith.constant 8 : i32
    %276 = arith.muli %c9_i32, %c8_i32_83 : i32
    %277 = tpu.assume_multiple %276, 8 : i32
    %278 = arith.index_cast %277 : i32 to index
    %c0_84 = arith.constant 0 : index
    %279 = vector.load %arg9[%278, %c0_84] : memref<112x128xbf16, #tpu.memory_space<vmem>>, vector<8x128xbf16>
    %280 = arith.extf %279 : vector<8x128xbf16> to vector<8x128xf32>
    %281 = vector.broadcast %26 : vector<1x128xf32> to vector<8x128xf32>
    %282 = arith.addf %280, %281 : vector<8x128xf32>
    %283 = arith.addf %282, %275 : vector<8x128xf32>
    %284 = arith.negf %283 : vector<8x128xf32>
    %285 = math.exp %284 : vector<8x128xf32>
    %cst_85 = arith.constant 1.000000e+00 : f32
    %286 = vector.broadcast %cst_85 : f32 to vector<8x128xf32>
    %287 = arith.addf %286, %285 : vector<8x128xf32>
    %288 = arith.divf %286, %287 : vector<8x128xf32>
    %289 = math.tanh %283 : vector<8x128xf32>
    %290 = vector.extract_strided_slice %288 {offsets = [0, 0], sizes = [8, 32], strides = [1, 1]} : vector<8x128xf32> to vector<8x32xf32>
    %291 = vector.extract_strided_slice %288 {offsets = [0, 32], sizes = [8, 32], strides = [1, 1]} : vector<8x128xf32> to vector<8x32xf32>
    %292 = vector.extract_strided_slice %289 {offsets = [0, 64], sizes = [8, 32], strides = [1, 1]} : vector<8x128xf32> to vector<8x32xf32>
    %293 = vector.extract_strided_slice %288 {offsets = [0, 96], sizes = [8, 32], strides = [1, 1]} : vector<8x128xf32> to vector<8x32xf32>
    %294 = arith.mulf %291, %269 : vector<8x32xf32>
    %295 = arith.mulf %290, %292 : vector<8x32xf32>
    %296 = arith.addf %294, %295 : vector<8x32xf32>
    %297 = math.tanh %296 : vector<8x32xf32>
    %298 = arith.mulf %293, %297 : vector<8x32xf32>
    %299 = tpu.concatenate %298, %27 in 1 : vector<8x32xf32>, vector<8x96xf32> -> vector<8x128xf32>
    %c10_i32 = arith.constant 10 : i32
    %300 = arith.truncf %299 : vector<8x128xf32> to vector<8x128xbf16>
    %c0_86 = arith.constant 0 : index
    %c0_87 = arith.constant 0 : index
    %301 = vector.load %arg4[%c0_86, %c0_87] : memref<128x128xbf16, #tpu.memory_space<vmem>>, vector<128x128xbf16>
    %cst_88 = arith.constant dense<0.000000e+00> : vector<8x128xf32>
    %302 = tpu.matmul %300, %301, %cst_88 {dimension_numbers = #tpu.dot_dimension_numbers<[1], [0], [0], [1], [0, 0, 1, 1], [], []>} : vector<8x128xbf16>, vector<128x128xbf16>, vector<8x128xf32> -> vector<8x128xf32>
    %c8_i32_89 = arith.constant 8 : i32
    %303 = arith.muli %c10_i32, %c8_i32_89 : i32
    %304 = tpu.assume_multiple %303, 8 : i32
    %305 = arith.index_cast %304 : i32 to index
    %c0_90 = arith.constant 0 : index
    %306 = vector.load %arg9[%305, %c0_90] : memref<112x128xbf16, #tpu.memory_space<vmem>>, vector<8x128xbf16>
    %307 = arith.extf %306 : vector<8x128xbf16> to vector<8x128xf32>
    %308 = vector.broadcast %26 : vector<1x128xf32> to vector<8x128xf32>
    %309 = arith.addf %307, %308 : vector<8x128xf32>
    %310 = arith.addf %309, %302 : vector<8x128xf32>
    %311 = arith.negf %310 : vector<8x128xf32>
    %312 = math.exp %311 : vector<8x128xf32>
    %cst_91 = arith.constant 1.000000e+00 : f32
    %313 = vector.broadcast %cst_91 : f32 to vector<8x128xf32>
    %314 = arith.addf %313, %312 : vector<8x128xf32>
    %315 = arith.divf %313, %314 : vector<8x128xf32>
    %316 = math.tanh %310 : vector<8x128xf32>
    %317 = vector.extract_strided_slice %315 {offsets = [0, 0], sizes = [8, 32], strides = [1, 1]} : vector<8x128xf32> to vector<8x32xf32>
    %318 = vector.extract_strided_slice %315 {offsets = [0, 32], sizes = [8, 32], strides = [1, 1]} : vector<8x128xf32> to vector<8x32xf32>
    %319 = vector.extract_strided_slice %316 {offsets = [0, 64], sizes = [8, 32], strides = [1, 1]} : vector<8x128xf32> to vector<8x32xf32>
    %320 = vector.extract_strided_slice %315 {offsets = [0, 96], sizes = [8, 32], strides = [1, 1]} : vector<8x128xf32> to vector<8x32xf32>
    %321 = arith.mulf %318, %296 : vector<8x32xf32>
    %322 = arith.mulf %317, %319 : vector<8x32xf32>
    %323 = arith.addf %321, %322 : vector<8x32xf32>
    %324 = math.tanh %323 : vector<8x32xf32>
    %325 = arith.mulf %320, %324 : vector<8x32xf32>
    %326 = tpu.concatenate %325, %27 in 1 : vector<8x32xf32>, vector<8x96xf32> -> vector<8x128xf32>
    %c11_i32 = arith.constant 11 : i32
    %327 = arith.truncf %326 : vector<8x128xf32> to vector<8x128xbf16>
    %c0_92 = arith.constant 0 : index
    %c0_93 = arith.constant 0 : index
    %328 = vector.load %arg4[%c0_92, %c0_93] : memref<128x128xbf16, #tpu.memory_space<vmem>>, vector<128x128xbf16>
    %cst_94 = arith.constant dense<0.000000e+00> : vector<8x128xf32>
    %329 = tpu.matmul %327, %328, %cst_94 {dimension_numbers = #tpu.dot_dimension_numbers<[1], [0], [0], [1], [0, 0, 1, 1], [], []>} : vector<8x128xbf16>, vector<128x128xbf16>, vector<8x128xf32> -> vector<8x128xf32>
    %c8_i32_95 = arith.constant 8 : i32
    %330 = arith.muli %c11_i32, %c8_i32_95 : i32
    %331 = tpu.assume_multiple %330, 8 : i32
    %332 = arith.index_cast %331 : i32 to index
    %c0_96 = arith.constant 0 : index
    %333 = vector.load %arg9[%332, %c0_96] : memref<112x128xbf16, #tpu.memory_space<vmem>>, vector<8x128xbf16>
    %334 = arith.extf %333 : vector<8x128xbf16> to vector<8x128xf32>
    %335 = vector.broadcast %26 : vector<1x128xf32> to vector<8x128xf32>
    %336 = arith.addf %334, %335 : vector<8x128xf32>
    %337 = arith.addf %336, %329 : vector<8x128xf32>
    %338 = arith.negf %337 : vector<8x128xf32>
    %339 = math.exp %338 : vector<8x128xf32>
    %cst_97 = arith.constant 1.000000e+00 : f32
    %340 = vector.broadcast %cst_97 : f32 to vector<8x128xf32>
    %341 = arith.addf %340, %339 : vector<8x128xf32>
    %342 = arith.divf %340, %341 : vector<8x128xf32>
    %343 = math.tanh %337 : vector<8x128xf32>
    %344 = vector.extract_strided_slice %342 {offsets = [0, 0], sizes = [8, 32], strides = [1, 1]} : vector<8x128xf32> to vector<8x32xf32>
    %345 = vector.extract_strided_slice %342 {offsets = [0, 32], sizes = [8, 32], strides = [1, 1]} : vector<8x128xf32> to vector<8x32xf32>
    %346 = vector.extract_strided_slice %343 {offsets = [0, 64], sizes = [8, 32], strides = [1, 1]} : vector<8x128xf32> to vector<8x32xf32>
    %347 = vector.extract_strided_slice %342 {offsets = [0, 96], sizes = [8, 32], strides = [1, 1]} : vector<8x128xf32> to vector<8x32xf32>
    %348 = arith.mulf %345, %323 : vector<8x32xf32>
    %349 = arith.mulf %344, %346 : vector<8x32xf32>
    %350 = arith.addf %348, %349 : vector<8x32xf32>
    %351 = math.tanh %350 : vector<8x32xf32>
    %352 = arith.mulf %347, %351 : vector<8x32xf32>
    %353 = tpu.concatenate %352, %27 in 1 : vector<8x32xf32>, vector<8x96xf32> -> vector<8x128xf32>
    %c12_i32 = arith.constant 12 : i32
    %354 = arith.truncf %353 : vector<8x128xf32> to vector<8x128xbf16>
    %c0_98 = arith.constant 0 : index
    %c0_99 = arith.constant 0 : index
    %355 = vector.load %arg4[%c0_98, %c0_99] : memref<128x128xbf16, #tpu.memory_space<vmem>>, vector<128x128xbf16>
    %cst_100 = arith.constant dense<0.000000e+00> : vector<8x128xf32>
    %356 = tpu.matmul %354, %355, %cst_100 {dimension_numbers = #tpu.dot_dimension_numbers<[1], [0], [0], [1], [0, 0, 1, 1], [], []>} : vector<8x128xbf16>, vector<128x128xbf16>, vector<8x128xf32> -> vector<8x128xf32>
    %c8_i32_101 = arith.constant 8 : i32
    %357 = arith.muli %c12_i32, %c8_i32_101 : i32
    %358 = tpu.assume_multiple %357, 8 : i32
    %359 = arith.index_cast %358 : i32 to index
    %c0_102 = arith.constant 0 : index
    %360 = vector.load %arg9[%359, %c0_102] : memref<112x128xbf16, #tpu.memory_space<vmem>>, vector<8x128xbf16>
    %361 = arith.extf %360 : vector<8x128xbf16> to vector<8x128xf32>
    %362 = vector.broadcast %26 : vector<1x128xf32> to vector<8x128xf32>
    %363 = arith.addf %361, %362 : vector<8x128xf32>
    %364 = arith.addf %363, %356 : vector<8x128xf32>
    %365 = arith.negf %364 : vector<8x128xf32>
    %366 = math.exp %365 : vector<8x128xf32>
    %cst_103 = arith.constant 1.000000e+00 : f32
    %367 = vector.broadcast %cst_103 : f32 to vector<8x128xf32>
    %368 = arith.addf %367, %366 : vector<8x128xf32>
    %369 = arith.divf %367, %368 : vector<8x128xf32>
    %370 = math.tanh %364 : vector<8x128xf32>
    %371 = vector.extract_strided_slice %369 {offsets = [0, 0], sizes = [8, 32], strides = [1, 1]} : vector<8x128xf32> to vector<8x32xf32>
    %372 = vector.extract_strided_slice %369 {offsets = [0, 32], sizes = [8, 32], strides = [1, 1]} : vector<8x128xf32> to vector<8x32xf32>
    %373 = vector.extract_strided_slice %370 {offsets = [0, 64], sizes = [8, 32], strides = [1, 1]} : vector<8x128xf32> to vector<8x32xf32>
    %374 = vector.extract_strided_slice %369 {offsets = [0, 96], sizes = [8, 32], strides = [1, 1]} : vector<8x128xf32> to vector<8x32xf32>
    %375 = arith.mulf %372, %350 : vector<8x32xf32>
    %376 = arith.mulf %371, %373 : vector<8x32xf32>
    %377 = arith.addf %375, %376 : vector<8x32xf32>
    %378 = math.tanh %377 : vector<8x32xf32>
    %379 = arith.mulf %374, %378 : vector<8x32xf32>
    %380 = tpu.concatenate %379, %27 in 1 : vector<8x32xf32>, vector<8x96xf32> -> vector<8x128xf32>
    %c13_i32 = arith.constant 13 : i32
    %381 = arith.truncf %380 : vector<8x128xf32> to vector<8x128xbf16>
    %c0_104 = arith.constant 0 : index
    %c0_105 = arith.constant 0 : index
    %382 = vector.load %arg4[%c0_104, %c0_105] : memref<128x128xbf16, #tpu.memory_space<vmem>>, vector<128x128xbf16>
    %cst_106 = arith.constant dense<0.000000e+00> : vector<8x128xf32>
    %383 = tpu.matmul %381, %382, %cst_106 {dimension_numbers = #tpu.dot_dimension_numbers<[1], [0], [0], [1], [0, 0, 1, 1], [], []>} : vector<8x128xbf16>, vector<128x128xbf16>, vector<8x128xf32> -> vector<8x128xf32>
    %c8_i32_107 = arith.constant 8 : i32
    %384 = arith.muli %c13_i32, %c8_i32_107 : i32
    %385 = tpu.assume_multiple %384, 8 : i32
    %386 = arith.index_cast %385 : i32 to index
    %c0_108 = arith.constant 0 : index
    %387 = vector.load %arg9[%386, %c0_108] : memref<112x128xbf16, #tpu.memory_space<vmem>>, vector<8x128xbf16>
    %388 = arith.extf %387 : vector<8x128xbf16> to vector<8x128xf32>
    %389 = vector.broadcast %26 : vector<1x128xf32> to vector<8x128xf32>
    %390 = arith.addf %388, %389 : vector<8x128xf32>
    %391 = arith.addf %390, %383 : vector<8x128xf32>
    %392 = arith.negf %391 : vector<8x128xf32>
    %393 = math.exp %392 : vector<8x128xf32>
    %cst_109 = arith.constant 1.000000e+00 : f32
    %394 = vector.broadcast %cst_109 : f32 to vector<8x128xf32>
    %395 = arith.addf %394, %393 : vector<8x128xf32>
    %396 = arith.divf %394, %395 : vector<8x128xf32>
    %397 = math.tanh %391 : vector<8x128xf32>
    %398 = vector.extract_strided_slice %396 {offsets = [0, 0], sizes = [8, 32], strides = [1, 1]} : vector<8x128xf32> to vector<8x32xf32>
    %399 = vector.extract_strided_slice %396 {offsets = [0, 32], sizes = [8, 32], strides = [1, 1]} : vector<8x128xf32> to vector<8x32xf32>
    %400 = vector.extract_strided_slice %397 {offsets = [0, 64], sizes = [8, 32], strides = [1, 1]} : vector<8x128xf32> to vector<8x32xf32>
    %401 = vector.extract_strided_slice %396 {offsets = [0, 96], sizes = [8, 32], strides = [1, 1]} : vector<8x128xf32> to vector<8x32xf32>
    %402 = arith.mulf %399, %377 : vector<8x32xf32>
    %403 = arith.mulf %398, %400 : vector<8x32xf32>
    %404 = arith.addf %402, %403 : vector<8x32xf32>
    %405 = math.tanh %404 : vector<8x32xf32>
    %406 = arith.mulf %401, %405 : vector<8x32xf32>
    %407 = tpu.concatenate %406, %27 in 1 : vector<8x32xf32>, vector<8x96xf32> -> vector<8x128xf32>
    %c14_i32 = arith.constant 14 : i32
    %408 = arith.truncf %407 : vector<8x128xf32> to vector<8x128xbf16>
    %c0_110 = arith.constant 0 : index
    %c0_111 = arith.constant 0 : index
    %409 = vector.load %arg6[%c0_110, %c0_111] : memref<128x128xbf16, #tpu.memory_space<vmem>>, vector<128x128xbf16>
    %cst_112 = arith.constant dense<0.000000e+00> : vector<8x128xf32>
    %410 = tpu.matmul %408, %409, %cst_112 {dimension_numbers = #tpu.dot_dimension_numbers<[1], [0], [0], [1], [0, 0, 1, 1], [], []>} : vector<8x128xbf16>, vector<128x128xbf16>, vector<8x128xf32> -> vector<8x128xf32>
    %c0_113 = arith.constant 0 : index
    %c0_114 = arith.constant 0 : index
    %411 = vector.load %arg7[%c0_113, %c0_114] : memref<1x128xf32, #tpu.memory_space<vmem>>, vector<1x128xf32>
    %412 = vector.broadcast %411 : vector<1x128xf32> to vector<8x128xf32>
    %413 = arith.addf %410, %412 : vector<8x128xf32>
    %c0_115 = arith.constant 0 : index
    %c0_116 = arith.constant 0 : index
    %414 = vector.load %arg8[%c0_115, %c0_116] : memref<8x128xf32, #tpu.memory_space<vmem>>, vector<8x128xf32>
    tpu.vector_store %arg8[%c0_115, %c0_116], %413 {strides = array<i32>} : memref<8x128xf32, #tpu.memory_space<vmem>>, vector<8x128xf32>,
    return
  }
}

</mosaic_0001>

<llo_original>
// kernel: cnn_lstm_forward.1
$region0: #{cnn_lstm_forward.1}
  #allocation0 [shape = 'u32[]', space=smem, size = 0x4, offset = 0x4, fixed_abs, tag = 'smem constant byte address 0x4 - core index']
  #allocation1 [shape = 'u32[144,128]{1,0:T(1,128)}', space=vmem, size = 0x12000, scoped, tag = 'internal scratch']
  #allocation2 [shape = 'bf16[112,128]{1,0:T(8,128)(2,1)}', space=vmem, size = 0x7000, scoped, tag = 'scratch operand']
  %s0 = inlined_call_operand.vmem [shape: bf16[128,128], index: 0, kind: input, shape index: {}]
  %s1 = inlined_call_operand.hbm [shape: bf16[3,128,128], index: 1, kind: input, shape index: {}]
  %s2 = inlined_call_operand.hbm [shape: f32[1,128], index: 2, kind: input, shape index: {}]
  %s3 = inlined_call_operand.vmem [shape: bf16[128,128], index: 3, kind: input, shape index: {}]
  %s4 = inlined_call_operand.vmem [shape: bf16[128,128], index: 4, kind: input, shape index: {}]
  %s5 = inlined_call_operand.vmem [shape: f32[1,128], index: 5, kind: input, shape index: {}]
  %s6 = inlined_call_operand.hbm [shape: bf16[128,128], index: 6, kind: input, shape index: {}]
  %s7 = inlined_call_operand.hbm [shape: f32[1,128], index: 7, kind: input, shape index: {}]
  %s8 = inlined_call_operand.vmem [shape: f32[8,128], index: 8, kind: output, shape index: {}]
  %s9 = sld [smem:[#allocation0]]
  $region58: #{cnn_lstm_forward.1} parent=0
    _
  %s11 = ssub.s32 1, %s9
  %s12 = scalar_select 0, %s11, %s9
  $region1: #{cnn_lstm_forward.1} parent=0
    #allocation3 [shape = 'u8[98304]{0}', space=vmem, size = 0x18000, scoped, tag = 'input window, operand 1, single buffered']
    #allocation4 [shape = 's32[1]{0}', space=sflag, size = 0x4, scoped, tag = 'scoped memory for cnn_lstm_forward.1']
    #allocation5 [shape = 'u8[512]{0}', space=vmem, size = 0x400, scoped, tag = 'input window, operand 2, single buffered']
    #allocation6 [shape = 's32[1]{0}', space=sflag, size = 0x4, scoped, tag = 'scoped memory for cnn_lstm_forward.1']
    #allocation7 [shape = 'u8[32768]{0}', space=vmem, size = 0x8000, scoped, tag = 'input window, operand 6, single buffered']
    #allocation8 [shape = 'u8[512]{0}', space=vmem, size = 0x400, scoped, tag = 'input window, operand 7, single buffered']
    #allocation9 [shape = 's32[1]{0}', space=sflag, size = 0x4, scoped, tag = 'scoped memory for cnn_lstm_forward.1']
    %13 = vsyncpa [#allocation4], 0
    %14 = vsyncpa [#allocation6], 0
    %15 = vsyncpa [#allocation9], 0
    // Predicated region
    $region2: #{cnn_lstm_forward.1} parent=1 // pred_check
      _
    $region3: #{cnn_lstm_forward.1} parent=1 // pred_check_branch
      %17 = sbr.rel (0) target = $region5
    $region4: #{cnn_lstm_forward.1} parent=1 // pred_region
      _
    $region5: #{cnn_lstm_forward.1} parent=1 // pred_fallthru
      _
    // Predicated region
    $region6: #{cnn_lstm_forward.1} parent=1 // pred_check
      _
    $region7: #{cnn_lstm_forward.1} parent=1 // pred_check_branch
      %19 = sbr.rel (0) target = $region9
    $region8: #{cnn_lstm_forward.1} parent=1 // pred_region
      %s21 = ssub.s32 3072, 3072
      %22 = vsyncadd [#allocation4], %s21
      %s23 = sshll.u32 [#allocation3], 4
      %s24 = int_to_ptr.vmem [resolvable:$true] %s23
      %29 = dma.hbm_to_vmem [thread:$0]  %s1, 3072, %s24, [#allocation4], 64, 64, 4
    $region9: #{cnn_lstm_forward.1} parent=1 // pred_fallthru
      _
    // Predicated region
    $region10: #{cnn_lstm_forward.1} parent=1 // pred_check
      _
    $region11: #{cnn_lstm_forward.1} parent=1 // pred_check_branch
      %31 = sbr.rel (0) target = $region13
    $region12: #{cnn_lstm_forward.1} parent=1 // pred_region
      %s33 = ssub.s32 16, 16
      %34 = vsyncadd [#allocation6], %s33
      %s36 = sshll.u32 [#allocation5], 4
      %s37 = int_to_ptr.vmem [resolvable:$true] %s36
      %39 = dma.hbm_to_vmem [thread:$0]  %s2, 16, %s37, [#allocation6]
    $region13: #{cnn_lstm_forward.1} parent=1 // pred_fallthru
      _
    // Predicated region
    $region14: #{cnn_lstm_forward.1} parent=1 // pred_check
      _
    $region15: #{cnn_lstm_forward.1} parent=1 // pred_check_branch
      %41 = sbr.rel (0) target = $region17
    $region16: #{cnn_lstm_forward.1} parent=1 // pred_region
      _
    $region17: #{cnn_lstm_forward.1} parent=1 // pred_fallthru
      _
    // Predicated region
    $region18: #{cnn_lstm_forward.1} parent=1 // pred_check
      _
    $region19: #{cnn_lstm_forward.1} parent=1 // pred_check_branch
      %43 = sbr.rel (0) target = $region21
    $region20: #{cnn_lstm_forward.1} parent=1 // pred_region
      _
    $region21: #{cnn_lstm_forward.1} parent=1 // pred_fallthru
      _
    // Predicated region
    $region22: #{cnn_lstm_forward.1} parent=1 // pred_check
      _
    $region23: #{cnn_lstm_forward.1} parent=1 // pred_check_branch
      %45 = sbr.rel (0) target = $region25
    $region24: #{cnn_lstm_forward.1} parent=1 // pred_region
      _
    $region25: #{cnn_lstm_forward.1} parent=1 // pred_fallthru
      _
    // Predicated region
    $region26: #{cnn_lstm_forward.1} parent=1 // pred_check
      _
    $region27: #{cnn_lstm_forward.1} parent=1 // pred_check_branch
      %47 = sbr.rel (0) target = $region29
    $region28: #{cnn_lstm_forward.1} parent=1 // pred_region
      %s49 = ssub.s32 1024, 1024
      %50 = vsyncadd [#allocation6], %s49
      %s51 = sshll.u32 [#allocation7], 4
      %s52 = int_to_ptr.vmem [resolvable:$true] %s51
      %57 = dma.hbm_to_vmem [thread:$0]  %s6, 1024, %s52, [#allocation6], 64, 64, 4
    $region29: #{cnn_lstm_forward.1} parent=1 // pred_fallthru
      _
    // Predicated region
    $region30: #{cnn_lstm_forward.1} parent=1 // pred_check
      _
    $region31: #{cnn_lstm_forward.1} parent=1 // pred_check_branch
      %59 = sbr.rel (0) target = $region33
    $region32: #{cnn_lstm_forward.1} parent=1 // pred_region
      %s61 = ssub.s32 16, 16
      %62 = vsyncadd [#allocation9], %s61
      %s64 = sshll.u32 [#allocation8], 4
      %s65 = int_to_ptr.vmem [resolvable:$true] %s64
      %67 = dma.hbm_to_vmem [thread:$0]  %s7, 16, %s65, [#allocation9]
    $region33: #{cnn_lstm_forward.1} parent=1 // pred_fallthru
      _
    // Predicated region
    $region34: #{cnn_lstm_forward.1} parent=1 // pred_check
      _
    $region35: #{cnn_lstm_forward.1} parent=1 // pred_check_branch
      %69 = sbr.rel (0) target = $region37
    $region36: #{cnn_lstm_forward.1} parent=1 // pred_region
      %70 = dma.done [#allocation4], 3072
    $region37: #{cnn_lstm_forward.1} parent=1 // pred_fallthru
      _
    // Predicated region
    $region38: #{cnn_lstm_forward.1} parent=1 // pred_check
      _
    $region39: #{cnn_lstm_forward.1} parent=1 // pred_check_branch
      %72 = sbr.rel (0) target = $region41
    $region40: #{cnn_lstm_forward.1} parent=1 // pred_region
      %73 = dma.done [#allocation6], 16
    $region41: #{cnn_lstm_forward.1} parent=1 // pred_fallthru
      _
    // Predicated region
    $region42: #{cnn_lstm_forward.1} parent=1 // pred_check
      _
    $region43: #{cnn_lstm_forward.1} parent=1 // pred_check_branch
      %75 = sbr.rel (0) target = $region45
    $region44: #{cnn_lstm_forward.1} parent=1 // pred_region
      %76 = dma.done [#allocation6], 1024
    $region45: #{cnn_lstm_forward.1} parent=1 // pred_fallthru
      _
    // Predicated region
    $region46: #{cnn_lstm_forward.1} parent=1 // pred_check
      _
    $region47: #{cnn_lstm_forward.1} parent=1 // pred_check_branch
      %78 = sbr.rel (0) target = $region49
    $region48: #{cnn_lstm_forward.1} parent=1 // pred_region
      %79 = dma.done [#allocation9], 16
    $region49: #{cnn_lstm_forward.1} parent=1 // pred_fallthru
      _
    %v81 = vld [vmem:[%s0] sm:$0xf]
    %v82 = vld [vmem:[%s0 + $0x4] sm:$0xf]
    %v83 = vld [vmem:[%s0 + $0x8] sm:$0xf]
    %v84 = vld [vmem:[%s0 + $0xc] sm:$0xf]
    %v85 = vld [vmem:[%s0 + $0x10] sm:$0xf]
    %v86 = vld [vmem:[%s0 + $0x14] sm:$0xf]
    %v87 = vld [vmem:[%s0 + $0x18] sm:$0xf]
    %v88 = vld [vmem:[%s0 + $0x1c] sm:$0xf]
    %v89 = vld [vmem:[%s0 + $0x20] sm:$0xf]
    %v90 = vld [vmem:[%s0 + $0x24] sm:$0xf]
    %v91 = vld [vmem:[%s0 + $0x28] sm:$0xf]
    %v92 = vld [vmem:[%s0 + $0x2c] sm:$0xf]
    %v93 = vld [vmem:[%s0 + $0x30] sm:$0xf]
    %v94 = vld [vmem:[%s0 + $0x34] sm:$0xf]
    %v95 = vld [vmem:[#allocation3] sm:$0xf]
    %v96 = vld [vmem:[#allocation3 + $0x4] sm:$0xf]
    %v97 = vld [vmem:[#allocation3 + $0x8] sm:$0xf]
    %v98 = vld [vmem:[#allocation3 + $0xc] sm:$0xf]
    %v99 = vld [vmem:[#allocation3 + $0x10] sm:$0xf]
    %v100 = vld [vmem:[#allocation3 + $0x14] sm:$0xf]
    %v101 = vld [vmem:[#allocation3 + $0x18] sm:$0xf]
    %v102 = vld [vmem:[#allocation3 + $0x1c] sm:$0xf]
    %v103 = vld [vmem:[#allocation3 + $0x20] sm:$0xf]
    %v104 = vld [vmem:[#allocation3 + $0x24] sm:$0xf]
    %v105 = vld [vmem:[#allocation3 + $0x28] sm:$0xf]
    %v106 = vld [vmem:[#allocation3 + $0x2c] sm:$0xf]
    %v107 = vld [vmem:[#allocation3 + $0x30] sm:$0xf]
    %v108 = vld [vmem:[#allocation3 + $0x34] sm:$0xf]
    %v109 = vld [vmem:[#allocation3 + $0x38] sm:$0xf]
    %v110 = vld [vmem:[#allocation3 + $0x3c] sm:$0xf]
    %v111 = vld [vmem:[%s0 + $0x38] sm:$0xf]
    %s112 = scalar_lea.vmem [#allocation3], 64
    %v113 = vld [vmem:[%s112] sm:$0xf]
    %v114 = vld [vmem:[%s112 + $0x4] sm:$0xf]
    %v115 = vld [vmem:[%s112 + $0x8] sm:$0xf]
    %v116 = vld [vmem:[%s112 + $0xc] sm:$0xf]
    %v117 = vld [vmem:[%s112 + $0x10] sm:$0xf]
    %v118 = vld [vmem:[%s112 + $0x14] sm:$0xf]
    %v119 = vld [vmem:[%s112 + $0x18] sm:$0xf]
    %v120 = vld [vmem:[%s112 + $0x1c] sm:$0xf]
    %v121 = vld [vmem:[%s112 + $0x20] sm:$0xf]
    %v122 = vld [vmem:[%s112 + $0x24] sm:$0xf]
    %v123 = vld [vmem:[%s112 + $0x28] sm:$0xf]
    %v124 = vld [vmem:[%s112 + $0x2c] sm:$0xf]
    %v125 = vld [vmem:[%s112 + $0x30] sm:$0xf]
    %v126 = vld [vmem:[%s112 + $0x34] sm:$0xf]
    %v127 = vld [vmem:[%s112 + $0x38] sm:$0xf]
    %v128 = vld [vmem:[%s112 + $0x3c] sm:$0xf]
    %v143 = vunpack.c.l.b16 %v82
    %v144 = vunpack.c.l.b16 %v83
    %v145 = vunpack.c.l.b16 %v84
    %v146 = vunpack.c.l.b16 %v85
    %v147 = vunpack.c.l.b16 %v86
    %v148 = vunpack.c.l.b16 %v87
    %v149 = vunpack.c.l.b16 %v88
    %v150 = vunpack.c.l.b16 %v89
    %v151 = vunpack.c.l.b16 %v90
    %v152 = vunpack.c.l.b16 %v91
    %v153 = vunpack.c.l.b16 %v92
    %v154 = vunpack.c.l.b16 %v93
    %v155 = vunpack.c.l.b16 %v94
    %v156 = vunpack.c.l.b16 %v111
    %v157 = vpack.c.b16 %v144, %v143
    %v158 = vpack.c.b16 %v146, %v145
    %v159 = vpack.c.b16 %v148, %v147
    %v160 = vpack.c.b16 %v150, %v149
    %v161 = vpack.c.b16 %v152, %v151
    %v162 = vpack.c.b16 %v154, %v153
    %v163 = vpack.c.b16 %v156, %v155
    %v187 = vunpack.c.l.b16 %v113
    %v188 = vunpack.c.l.b16 %v114
    %v189 = vunpack.c.l.b16 %v115
    %v190 = vunpack.c.l.b16 %v116
    %v191 = vunpack.c.l.b16 %v117
    %v192 = vunpack.c.l.b16 %v118
    %v193 = vunpack.c.l.b16 %v119
    %v194 = vunpack.c.l.b16 %v120
    %v195 = vunpack.c.l.b16 %v121
    %v196 = vunpack.c.l.b16 %v122
    %v197 = vunpack.c.l.b16 %v123
    %v198 = vunpack.c.l.b16 %v124
    %v199 = vunpack.c.l.b16 %v125
    %v200 = vunpack.c.l.b16 %v126
    %v201 = vunpack.c.l.b16 %v127
    %v202 = vunpack.c.l.b16 %v128
    %v203 = vpack.c.b16 %v188, %v187
    %v204 = vpack.c.b16 %v190, %v189
    %v205 = vpack.c.b16 %v192, %v191
    %v206 = vpack.c.b16 %v194, %v193
    %v207 = vpack.c.b16 %v196, %v195
    %v208 = vpack.c.b16 %v198, %v197
    %v209 = vpack.c.b16 %v200, %v199
    %v210 = vpack.c.b16 %v202, %v201
    %219 = vmatprep.subr.bf16.mxu0 0
    %220 = vmatpush1.bf16.msra.mxu0 %v210
    %221 = vmatprep.subr.bf16.mxu0 0
    %222 = vmatpush1.bf16.msra.mxu0 %v209
    %223 = vmatprep.subr.bf16.mxu0 0
    %224 = vmatpush1.bf16.msra.mxu0 %v208
    %225 = vmatprep.subr.bf16.mxu0 0
    %226 = vmatpush1.bf16.msra.mxu0 %v207
    %227 = vmatprep.subr.bf16.mxu0 0
    %228 = vmatpush1.bf16.msra.mxu0 %v206
    %229 = vmatprep.subr.bf16.mxu0 0
    %230 = vmatpush1.bf16.msra.mxu0 %v205
    %231 = vmatprep.subr.bf16.mxu0 0
    %232 = vmatpush1.bf16.msra.mxu0 %v204
    %233 = vmatprep.subr.bf16.mxu0 0
    %234 = vmatpush1.bf16.msra.mxu0 %v203
    %235 = vmatprep.subr.bf16.mxu0 0
    %236 = vmatpush2.bf16.msra.mxu0 0
    %237 = vmatprep.subr.bf16.mxu0 0
    %238 = vmatpush2.bf16.msra.mxu0 0
    %239 = vmatprep.subr.bf16.mxu0 0
    %240 = vmatpush2.bf16.msra.mxu0 0
    %241 = vmatprep.subr.bf16.mxu0 0
    %242 = vmatpush2.bf16.msra.mxu0 0
    %243 = vmatprep.subr.bf16.mxu0 0
    %244 = vmatpush2.bf16.msra.mxu0 0
    %245 = vmatprep.subr.bf16.mxu0 0
    %246 = vmatpush2.bf16.msra.mxu0 0
    %247 = vmatprep.subr.bf16.mxu0 0
    %248 = vmatpush2.bf16.msra.mxu0 0
    %249 = vmatprep.subr.bf16.mxu0 0
    %250 = vmatpush2.bf16.msra.mxu0 0
    %251 = vmatprep.mubr.bf16.mxu0 0
    %252 = vmatmul.mubr.bf16.gmra.mxu0 %v157
    %v253 = vpop.f32.mrf.mxu0
    %v254 = vadd.f32 0.0, %v253
    %v255 = vpop.f32.mrf.mxu0
    %v256 = vpop.f32.mrf.mxu0
    %v257 = vadd.f32 0.0, %v256
    %v258 = vpop.f32.mrf.mxu0
    %259 = vmatprep.mubr.bf16.mxu0 0
    %260 = vmatmul.mubr.bf16.gmra.mxu0 %v158
    %v261 = vpop.f32.mrf.mxu0
    %v262 = vadd.f32 0.0, %v261
    %v263 = vpop.f32.mrf.mxu0
    %v264 = vpop.f32.mrf.mxu0
    %v265 = vadd.f32 0.0, %v264
    %v266 = vpop.f32.mrf.mxu0
    %267 = vmatprep.mubr.bf16.mxu0 0
    %268 = vmatmul.mubr.bf16.gmra.mxu0 %v159
    %v269 = vpop.f32.mrf.mxu0
    %v270 = vadd.f32 0.0, %v269
    %v271 = vpop.f32.mrf.mxu0
    %v272 = vpop.f32.mrf.mxu0
    %v273 = vadd.f32 0.0, %v272
    %v274 = vpop.f32.mrf.mxu0
    %275 = vmatprep.mubr.bf16.mxu0 0
    %276 = vmatmul.mubr.bf16.gmra.mxu0 %v160
    %v277 = vpop.f32.mrf.mxu0
    %v278 = vadd.f32 0.0, %v277
    %v279 = vpop.f32.mrf.mxu0
    %v280 = vpop.f32.mrf.mxu0
    %v281 = vadd.f32 0.0, %v280
    %v282 = vpop.f32.mrf.mxu0
    %283 = vmatprep.mubr.bf16.mxu0 0
    %284 = vmatmul.mubr.bf16.gmra.mxu0 %v161
    %v285 = vpop.f32.mrf.mxu0
    %v286 = vadd.f32 0.0, %v285
    %v287 = vpop.f32.mrf.mxu0
    %v288 = vpop.f32.mrf.mxu0
    %v289 = vadd.f32 0.0, %v288
    %v290 = vpop.f32.mrf.mxu0
    %291 = vmatprep.mubr.bf16.mxu0 0
    %292 = vmatmul.mubr.bf16.gmra.mxu0 %v162
    %v293 = vpop.f32.mrf.mxu0
    %v294 = vadd.f32 0.0, %v293
    %v295 = vpop.f32.mrf.mxu0
    %v296 = vpop.f32.mrf.mxu0
    %v297 = vadd.f32 0.0, %v296
    %v298 = vpop.f32.mrf.mxu0
    %299 = vmatprep.mubr.bf16.mxu0 0
    %300 = vmatmul.mubr.bf16.gmra.mxu0 %v163
    %v301 = vpop.f32.mrf.mxu0
    %v302 = vadd.f32 0.0, %v301
    %v303 = vpop.f32.mrf.mxu0
    %v304 = vpop.f32.mrf.mxu0
    %v305 = vadd.f32 0.0, %v304
    %v306 = vpop.f32.mrf.mxu0
    %307 = vdwg.mxu0
    %v309 = vunpack.c.l.b16 %v81
    %v310 = vpack.c.b16 %v143, %v309
    %v311 = vpack.c.b16 %v145, %v144
    %v312 = vpack.c.b16 %v147, %v146
    %v313 = vpack.c.b16 %v149, %v148
    %v314 = vpack.c.b16 %v151, %v150
    %v315 = vpack.c.b16 %v153, %v152
    %v316 = vpack.c.b16 %v155, %v154
    %v340 = vunpack.c.l.b16 %v95
    %v341 = vunpack.c.l.b16 %v96
    %v342 = vunpack.c.l.b16 %v97
    %v343 = vunpack.c.l.b16 %v98
    %v344 = vunpack.c.l.b16 %v99
    %v345 = vunpack.c.l.b16 %v100
    %v346 = vunpack.c.l.b16 %v101
    %v347 = vunpack.c.l.b16 %v102
    %v348 = vunpack.c.l.b16 %v103
    %v349 = vunpack.c.l.b16 %v104
    %v350 = vunpack.c.l.b16 %v105
    %v351 = vunpack.c.l.b16 %v106
    %v352 = vunpack.c.l.b16 %v107
    %v353 = vunpack.c.l.b16 %v108
    %v354 = vunpack.c.l.b16 %v109
    %v355 = vunpack.c.l.b16 %v110
    %v356 = vpack.c.b16 %v341, %v340
    %v357 = vpack.c.b16 %v343, %v342
    %v358 = vpack.c.b16 %v345, %v344
    %v359 = vpack.c.b16 %v347, %v346
    %v360 = vpack.c.b16 %v349, %v348
    %v361 = vpack.c.b16 %v351, %v350
    %v362 = vpack.c.b16 %v353, %v352
    %v363 = vpack.c.b16 %v355, %v354
    %372 = vmatprep.subr.bf16.mxu0 0
    %373 = vmatpush1.bf16.msra.mxu0 %v363
    %374 = vmatprep.subr.bf16.mxu0 0
    %375 = vmatpush1.bf16.msra.mxu0 %v362
    %376 = vmatprep.subr.bf16.mxu0 0
    %377 = vmatpush1.bf16.msra.mxu0 %v361
    %378 = vmatprep.subr.bf16.mxu0 0
    %379 = vmatpush1.bf16.msra.mxu0 %v360
    %380 = vmatprep.subr.bf16.mxu0 0
    %381 = vmatpush1.bf16.msra.mxu0 %v359
    %382 = vmatprep.subr.bf16.mxu0 0
    %383 = vmatpush1.bf16.msra.mxu0 %v358
    %384 = vmatprep.subr.bf16.mxu0 0
    %385 = vmatpush1.bf16.msra.mxu0 %v357
    %386 = vmatprep.subr.bf16.mxu0 0
    %387 = vmatpush1.bf16.msra.mxu0 %v356
    %388 = vmatprep.subr.bf16.mxu0 0
    %389 = vmatpush2.bf16.msra.mxu0 0
    %390 = vmatprep.subr.bf16.mxu0 0
    %391 = vmatpush2.bf16.msra.mxu0 0
    %392 = vmatprep.subr.bf16.mxu0 0
    %393 = vmatpush2.bf16.msra.mxu0 0
    %394 = vmatprep.subr.bf16.mxu0 0
    %395 = vmatpush2.bf16.msra.mxu0 0
    %396 = vmatprep.subr.bf16.mxu0 0
    %397 = vmatpush2.bf16.msra.mxu0 0
    %398 = vmatprep.subr.bf16.mxu0 0
    %399 = vmatpush2.bf16.msra.mxu0 0
    %400 = vmatprep.subr.bf16.mxu0 0
    %401 = vmatpush2.bf16.msra.mxu0 0
    %402 = vmatprep.subr.bf16.mxu0 0
    %403 = vmatpush2.bf16.msra.mxu0 0
    %404 = vmatprep.mubr.bf16.mxu0 0
    %405 = vmatmul.mubr.bf16.gmra.mxu0 %v310
    %v406 = vpop.f32.mrf.mxu0
    %v407 = vadd.f32 %v254, %v406
    %v408 = vpop.f32.mrf.mxu0
    %v409 = vpop.f32.mrf.mxu0
    %v410 = vadd.f32 %v257, %v409
    %v411 = vpop.f32.mrf.mxu0
    %412 = vmatprep.mubr.bf16.mxu0 0
    %413 = vmatmul.mubr.bf16.gmra.mxu0 %v311
    %v414 = vpop.f32.mrf.mxu0
    %v415 = vadd.f32 %v262, %v414
    %v416 = vpop.f32.mrf.mxu0
    %v417 = vpop.f32.mrf.mxu0
    %v418 = vadd.f32 %v265, %v417
    %v419 = vpop.f32.mrf.mxu0
    %420 = vmatprep.mubr.bf16.mxu0 0
    %421 = vmatmul.mubr.bf16.gmra.mxu0 %v312
    %v422 = vpop.f32.mrf.mxu0
    %v423 = vadd.f32 %v270, %v422
    %v424 = vpop.f32.mrf.mxu0
    %v425 = vpop.f32.mrf.mxu0
    %v426 = vadd.f32 %v273, %v425
    %v427 = vpop.f32.mrf.mxu0
    %428 = vmatprep.mubr.bf16.mxu0 0
    %429 = vmatmul.mubr.bf16.gmra.mxu0 %v313
    %v430 = vpop.f32.mrf.mxu0
    %v431 = vadd.f32 %v278, %v430
    %v432 = vpop.f32.mrf.mxu0
    %v433 = vpop.f32.mrf.mxu0
    %v434 = vadd.f32 %v281, %v433
    %v435 = vpop.f32.mrf.mxu0
    %436 = vmatprep.mubr.bf16.mxu0 0
    %437 = vmatmul.mubr.bf16.gmra.mxu0 %v314
    %v438 = vpop.f32.mrf.mxu0
    %v439 = vadd.f32 %v286, %v438
    %v440 = vpop.f32.mrf.mxu0
    %v441 = vpop.f32.mrf.mxu0
    %v442 = vadd.f32 %v289, %v441
    %v443 = vpop.f32.mrf.mxu0
    %444 = vmatprep.mubr.bf16.mxu0 0
    %445 = vmatmul.mubr.bf16.gmra.mxu0 %v315
    %v446 = vpop.f32.mrf.mxu0
    %v447 = vadd.f32 %v294, %v446
    %v448 = vpop.f32.mrf.mxu0
    %v449 = vpop.f32.mrf.mxu0
    %v450 = vadd.f32 %v297, %v449
    %v451 = vpop.f32.mrf.mxu0
    %452 = vmatprep.mubr.bf16.mxu0 0
    %453 = vmatmul.mubr.bf16.gmra.mxu0 %v316
    %v454 = vpop.f32.mrf.mxu0
    %v455 = vadd.f32 %v302, %v454
    %v456 = vpop.f32.mrf.mxu0
    %v457 = vpop.f32.mrf.mxu0
    %v458 = vadd.f32 %v305, %v457
    %v459 = vpop.f32.mrf.mxu0
    %460 = vdwg.mxu0
    %v461 = vld [vmem:[%s0 + $0x8] sm:$0xf]
    %v462 = vld [vmem:[%s0 + $0xc] sm:$0xf]
    %v463 = vld [vmem:[%s0 + $0x10] sm:$0xf]
    %v464 = vld [vmem:[%s0 + $0x14] sm:$0xf]
    %v465 = vld [vmem:[%s0 + $0x18] sm:$0xf]
    %v466 = vld [vmem:[%s0 + $0x1c] sm:$0xf]
    %v467 = vld [vmem:[%s0 + $0x20] sm:$0xf]
    %v468 = vld [vmem:[%s0 + $0x24] sm:$0xf]
    %v469 = vld [vmem:[%s0 + $0x28] sm:$0xf]
    %v470 = vld [vmem:[%s0 + $0x2c] sm:$0xf]
    %v471 = vld [vmem:[%s0 + $0x30] sm:$0xf]
    %v472 = vld [vmem:[%s0 + $0x34] sm:$0xf]
    %v473 = vld [vmem:[%s0 + $0x38] sm:$0xf]
    %v474 = vld [vmem:[%s0 + $0x3c] sm:$0xf]
    %s475 = scalar_lea.vmem [#allocation3], 128
    %v476 = vld [vmem:[%s475] sm:$0xf]
    %v477 = vld [vmem:[%s475 + $0x4] sm:$0xf]
    %v478 = vld [vmem:[%s475 + $0x8] sm:$0xf]
    %v479 = vld [vmem:[%s475 + $0xc] sm:$0xf]
    %v480 = vld [vmem:[%s475 + $0x10] sm:$0xf]
    %v481 = vld [vmem:[%s475 + $0x14] sm:$0xf]
    %v482 = vld [vmem:[%s475 + $0x18] sm:$0xf]
    %v483 = vld [vmem:[%s475 + $0x1c] sm:$0xf]
    %v484 = vld [vmem:[%s475 + $0x20] sm:$0xf]
    %v485 = vld [vmem:[%s475 + $0x24] sm:$0xf]
    %v486 = vld [vmem:[%s475 + $0x28] sm:$0xf]
    %v487 = vld [vmem:[%s475 + $0x2c] sm:$0xf]
    %v488 = vld [vmem:[%s475 + $0x30] sm:$0xf]
    %v489 = vld [vmem:[%s475 + $0x34] sm:$0xf]
    %v490 = vld [vmem:[%s475 + $0x38] sm:$0xf]
    %v491 = vld [vmem:[%s475 + $0x3c] sm:$0xf]
    %v506 = vunpack.c.l.b16 %v461
    %v507 = vunpack.c.l.b16 %v462
    %v508 = vunpack.c.l.b16 %v463
    %v509 = vunpack.c.l.b16 %v464
    %v510 = vunpack.c.l.b16 %v465
    %v511 = vunpack.c.l.b16 %v466
    %v512 = vunpack.c.l.b16 %v467
    %v513 = vunpack.c.l.b16 %v468
    %v514 = vunpack.c.l.b16 %v469
    %v515 = vunpack.c.l.b16 %v470
    %v516 = vunpack.c.l.b16 %v471
    %v517 = vunpack.c.l.b16 %v472
    %v518 = vunpack.c.l.b16 %v473
    %v519 = vunpack.c.l.b16 %v474
    %v520 = vpack.c.b16 %v507, %v506
    %v521 = vpack.c.b16 %v509, %v508
    %v522 = vpack.c.b16 %v511, %v510
    %v523 = vpack.c.b16 %v513, %v512
    %v524 = vpack.c.b16 %v515, %v514
    %v525 = vpack.c.b16 %v517, %v516
    %v526 = vpack.c.b16 %v519, %v518
    %v550 = vunpack.c.l.b16 %v476
    %v551 = vunpack.c.l.b16 %v477
    %v552 = vunpack.c.l.b16 %v478
    %v553 = vunpack.c.l.b16 %v479
    %v554 = vunpack.c.l.b16 %v480
    %v555 = vunpack.c.l.b16 %v481
    %v556 = vunpack.c.l.b16 %v482
    %v557 = vunpack.c.l.b16 %v483
    %v558 = vunpack.c.l.b16 %v484
    %v559 = vunpack.c.l.b16 %v485
    %v560 = vunpack.c.l.b16 %v486
    %v561 = vunpack.c.l.b16 %v487
    %v562 = vunpack.c.l.b16 %v488
    %v563 = vunpack.c.l.b16 %v489
    %v564 = vunpack.c.l.b16 %v490
    %v565 = vunpack.c.l.b16 %v491
    %v566 = vpack.c.b16 %v551, %v550
    %v567 = vpack.c.b16 %v553, %v552
    %v568 = vpack.c.b16 %v555, %v554
    %v569 = vpack.c.b16 %v557, %v556
    %v570 = vpack.c.b16 %v559, %v558
    %v571 = vpack.c.b16 %v561, %v560
    %v572 = vpack.c.b16 %v563, %v562
    %v573 = vpack.c.b16 %v565, %v564
    %582 = vmatprep.subr.bf16.mxu0 0
    %583 = vmatpush1.bf16.msra.mxu0 %v573
    %584 = vmatprep.subr.bf16.mxu0 0
    %585 = vmatpush1.bf16.msra.mxu0 %v572
    %586 = vmatprep.subr.bf16.mxu0 0
    %587 = vmatpush1.bf16.msra.mxu0 %v571
    %588 = vmatprep.subr.bf16.mxu0 0
    %589 = vmatpush1.bf16.msra.mxu0 %v570
    %590 = vmatprep.subr.bf16.mxu0 0
    %591 = vmatpush1.bf16.msra.mxu0 %v569
    %592 = vmatprep.subr.bf16.mxu0 0
    %593 = vmatpush1.bf16.msra.mxu0 %v568
    %594 = vmatprep.subr.bf16.mxu0 0
    %595 = vmatpush1.bf16.msra.mxu0 %v567
    %596 = vmatprep.subr.bf16.mxu0 0
    %597 = vmatpush1.bf16.msra.mxu0 %v566
    %598 = vmatprep.subr.bf16.mxu0 0
    %599 = vmatpush2.bf16.msra.mxu0 0
    %600 = vmatprep.subr.bf16.mxu0 0
    %601 = vmatpush2.bf16.msra.mxu0 0
    %602 = vmatprep.subr.bf16.mxu0 0
    %603 = vmatpush2.bf16.msra.mxu0 0
    %604 = vmatprep.subr.bf16.mxu0 0
    %605 = vmatpush2.bf16.msra.mxu0 0
    %606 = vmatprep.subr.bf16.mxu0 0
    %607 = vmatpush2.bf16.msra.mxu0 0
    %608 = vmatprep.subr.bf16.mxu0 0
    %609 = vmatpush2.bf16.msra.mxu0 0
    %610 = vmatprep.subr.bf16.mxu0 0
    %611 = vmatpush2.bf16.msra.mxu0 0
    %612 = vmatprep.subr.bf16.mxu0 0
    %613 = vmatpush2.bf16.msra.mxu0 0
    %614 = vmatprep.mubr.bf16.mxu0 0
    %615 = vmatmul.mubr.bf16.gmra.mxu0 %v520
    %v616 = vpop.f32.mrf.mxu0
    %v617 = vadd.f32 0.0, %v616
    %v618 = vpop.f32.mrf.mxu0
    %v619 = vpop.f32.mrf.mxu0
    %v620 = vadd.f32 0.0, %v619
    %v621 = vpop.f32.mrf.mxu0
    %622 = vmatprep.mubr.bf16.mxu0 0
    %623 = vmatmul.mubr.bf16.gmra.mxu0 %v521
    %v624 = vpop.f32.mrf.mxu0
    %v625 = vadd.f32 0.0, %v624
    %v626 = vpop.f32.mrf.mxu0
    %v627 = vpop.f32.mrf.mxu0
    %v628 = vadd.f32 0.0, %v627
    %v629 = vpop.f32.mrf.mxu0
    %630 = vmatprep.mubr.bf16.mxu0 0
    %631 = vmatmul.mubr.bf16.gmra.mxu0 %v522
    %v632 = vpop.f32.mrf.mxu0
    %v633 = vadd.f32 0.0, %v632
    %v634 = vpop.f32.mrf.mxu0
    %v635 = vpop.f32.mrf.mxu0
    %v636 = vadd.f32 0.0, %v635
    %v637 = vpop.f32.mrf.mxu0
    %638 = vmatprep.mubr.bf16.mxu0 0
    %639 = vmatmul.mubr.bf16.gmra.mxu0 %v523
    %v640 = vpop.f32.mrf.mxu0
    %v641 = vadd.f32 0.0, %v640
    %v642 = vpop.f32.mrf.mxu0
    %v643 = vpop.f32.mrf.mxu0
    %v644 = vadd.f32 0.0, %v643
    %v645 = vpop.f32.mrf.mxu0
    %646 = vmatprep.mubr.bf16.mxu0 0
    %647 = vmatmul.mubr.bf16.gmra.mxu0 %v524
    %v648 = vpop.f32.mrf.mxu0
    %v649 = vadd.f32 0.0, %v648
    %v650 = vpop.f32.mrf.mxu0
    %v651 = vpop.f32.mrf.mxu0
    %v652 = vadd.f32 0.0, %v651
    %v653 = vpop.f32.mrf.mxu0
    %654 = vmatprep.mubr.bf16.mxu0 0
    %655 = vmatmul.mubr.bf16.gmra.mxu0 %v525
    %v656 = vpop.f32.mrf.mxu0
    %v657 = vadd.f32 0.0, %v656
    %v658 = vpop.f32.mrf.mxu0
    %v659 = vpop.f32.mrf.mxu0
    %v660 = vadd.f32 0.0, %v659
    %v661 = vpop.f32.mrf.mxu0
    %662 = vmatprep.mubr.bf16.mxu0 0
    %663 = vmatmul.mubr.bf16.gmra.mxu0 %v526
    %v664 = vpop.f32.mrf.mxu0
    %v665 = vadd.f32 0.0, %v664
    %v666 = vpop.f32.mrf.mxu0
    %v667 = vpop.f32.mrf.mxu0
    %v668 = vadd.f32 0.0, %v667
    %v669 = vpop.f32.mrf.mxu0
    %670 = vdwg.mxu0
    %v671 = vadd.f32 %v407, %v617
    %v672 = vadd.f32 %v410, %v620
    %v673 = vadd.f32 %v415, %v625
    %v674 = vadd.f32 %v418, %v628
    %v675 = vadd.f32 %v423, %v633
    %v676 = vadd.f32 %v426, %v636
    %v677 = vadd.f32 %v431, %v641
    %v678 = vadd.f32 %v434, %v644
    %v679 = vadd.f32 %v439, %v649
    %v680 = vadd.f32 %v442, %v652
    %v681 = vadd.f32 %v447, %v657
    %v682 = vadd.f32 %v450, %v660
    %v683 = vadd.f32 %v455, %v665
    %v684 = vadd.f32 %v458, %v668
    %v685 = vld [vmem:[#allocation5] sm:$0x1]
    %v687 = vlaneseq
    %v688 = vshrl.u32 %v687, 7
    %v689 = vsub.s32 0, %v688
    %v690 = vrot.slane %v685, %v689
    %v692 = vadd.f32 %v671, %v690
    %v693 = vadd.f32 %v672, %v690
    %v694 = vadd.f32 %v673, %v690
    %v695 = vadd.f32 %v674, %v690
    %v696 = vadd.f32 %v675, %v690
    %v697 = vadd.f32 %v676, %v690
    %v698 = vadd.f32 %v677, %v690
    %v699 = vadd.f32 %v678, %v690
    %v700 = vadd.f32 %v679, %v690
    %v701 = vadd.f32 %v680, %v690
    %v702 = vadd.f32 %v681, %v690
    %v703 = vadd.f32 %v682, %v690
    %v704 = vadd.f32 %v683, %v690
    %v705 = vadd.f32 %v684, %v690
    %v706 = vmax.f32 %v692, 0.0
    %v707 = vmax.f32 %v693, 0.0
    %v708 = vmax.f32 %v694, 0.0
    %v709 = vmax.f32 %v695, 0.0
    %v710 = vmax.f32 %v696, 0.0
    %v711 = vmax.f32 %v697, 0.0
    %v712 = vmax.f32 %v698, 0.0
    %v713 = vmax.f32 %v699, 0.0
    %v714 = vmax.f32 %v700, 0.0
    %v715 = vmax.f32 %v701, 0.0
    %v716 = vmax.f32 %v702, 0.0
    %v717 = vmax.f32 %v703, 0.0
    %v718 = vmax.f32 %v704, 0.0
    %v719 = vmax.f32 %v705, 0.0
    %v720 = vpack.c.bf16 %v707, %v706
    %v721 = vpack.c.bf16 %v709, %v708
    %v722 = vpack.c.bf16 %v711, %v710
    %v723 = vpack.c.bf16 %v713, %v712
    %v724 = vpack.c.bf16 %v715, %v714
    %v725 = vpack.c.bf16 %v717, %v716
    %v726 = vpack.c.bf16 %v719, %v718
    %v727 = vld [vmem:[%s3] sm:$0xf]
    %v728 = vld [vmem:[%s3 + $0x4] sm:$0xf]
    %v729 = vld [vmem:[%s3 + $0x8] sm:$0xf]
    %v730 = vld [vmem:[%s3 + $0xc] sm:$0xf]
    %v731 = vld [vmem:[%s3 + $0x10] sm:$0xf]
    %v732 = vld [vmem:[%s3 + $0x14] sm:$0xf]
    %v733 = vld [vmem:[%s3 + $0x18] sm:$0xf]
    %v734 = vld [vmem:[%s3 + $0x1c] sm:$0xf]
    %v735 = vld [vmem:[%s3 + $0x20] sm:$0xf]
    %v736 = vld [vmem:[%s3 + $0x24] sm:$0xf]
    %v737 = vld [vmem:[%s3 + $0x28] sm:$0xf]
    %v738 = vld [vmem:[%s3 + $0x2c] sm:$0xf]
    %v739 = vld [vmem:[%s3 + $0x30] sm:$0xf]
    %v740 = vld [vmem:[%s3 + $0x34] sm:$0xf]
    %v741 = vld [vmem:[%s3 + $0x38] sm:$0xf]
    %v742 = vld [vmem:[%s3 + $0x3c] sm:$0xf]
    %v759 = vunpack.c.l.b16 %v727
    %v760 = vunpack.c.l.b16 %v728
    %v761 = vunpack.c.l.b16 %v729
    %v762 = vunpack.c.l.b16 %v730
    %v763 = vunpack.c.l.b16 %v731
    %v764 = vunpack.c.l.b16 %v732
    %v765 = vunpack.c.l.b16 %v733
    %v766 = vunpack.c.l.b16 %v734
    %v767 = vunpack.c.l.b16 %v735
    %v768 = vunpack.c.l.b16 %v736
    %v769 = vunpack.c.l.b16 %v737
    %v770 = vunpack.c.l.b16 %v738
    %v771 = vunpack.c.l.b16 %v739
    %v772 = vunpack.c.l.b16 %v740
    %v773 = vunpack.c.l.b16 %v741
    %v774 = vunpack.c.l.b16 %v742
    %v775 = vpack.c.b16 %v760, %v759
    %v776 = vpack.c.b16 %v762, %v761
    %v777 = vpack.c.b16 %v764, %v763
    %v778 = vpack.c.b16 %v766, %v765
    %v779 = vpack.c.b16 %v768, %v767
    %v780 = vpack.c.b16 %v770, %v769
    %v781 = vpack.c.b16 %v772, %v771
    %v782 = vpack.c.b16 %v774, %v773
    %791 = vmatprep.subr.bf16.mxu0 0
    %792 = vmatpush1.bf16.msra.mxu0 %v782
    %793 = vmatprep.subr.bf16.mxu0 0
    %794 = vmatpush1.bf16.msra.mxu0 %v781
    %795 = vmatprep.subr.bf16.mxu0 0
    %796 = vmatpush1.bf16.msra.mxu0 %v780
    %797 = vmatprep.subr.bf16.mxu0 0
    %798 = vmatpush1.bf16.msra.mxu0 %v779
    %799 = vmatprep.subr.bf16.mxu0 0
    %800 = vmatpush1.bf16.msra.mxu0 %v778
    %801 = vmatprep.subr.bf16.mxu0 0
    %802 = vmatpush1.bf16.msra.mxu0 %v777
    %803 = vmatprep.subr.bf16.mxu0 0
    %804 = vmatpush1.bf16.msra.mxu0 %v776
    %805 = vmatprep.subr.bf16.mxu0 0
    %806 = vmatpush1.bf16.msra.mxu0 %v775
    %807 = vmatprep.subr.bf16.mxu0 0
    %808 = vmatpush2.bf16.msra.mxu0 0
    %809 = vmatprep.subr.bf16.mxu0 0
    %810 = vmatpush2.bf16.msra.mxu0 0
    %811 = vmatprep.subr.bf16.mxu0 0
    %812 = vmatpush2.bf16.msra.mxu0 0
    %813 = vmatprep.subr.bf16.mxu0 0
    %814 = vmatpush2.bf16.msra.mxu0 0
    %815 = vmatprep.subr.bf16.mxu0 0
    %816 = vmatpush2.bf16.msra.mxu0 0
    %817 = vmatprep.subr.bf16.mxu0 0
    %818 = vmatpush2.bf16.msra.mxu0 0
    %819 = vmatprep.subr.bf16.mxu0 0
    %820 = vmatpush2.bf16.msra.mxu0 0
    %821 = vmatprep.subr.bf16.mxu0 0
    %822 = vmatpush2.bf16.msra.mxu0 0
    %823 = vmatprep.mubr.bf16.mxu0 0
    %824 = vmatmul.mubr.bf16.gmra.mxu0 %v720
    %v825 = vpop.f32.mrf.mxu0
    %v826 = vadd.f32 0.0, %v825
    %v827 = vpop.f32.mrf.mxu0
    %v828 = vpop.f32.mrf.mxu0
    %v829 = vadd.f32 0.0, %v828
    %v830 = vpop.f32.mrf.mxu0
    %831 = vmatprep.mubr.bf16.mxu0 0
    %832 = vmatmul.mubr.bf16.gmra.mxu0 %v721
    %v833 = vpop.f32.mrf.mxu0
    %v834 = vadd.f32 0.0, %v833
    %v835 = vpop.f32.mrf.mxu0
    %v836 = vpop.f32.mrf.mxu0
    %v837 = vadd.f32 0.0, %v836
    %v838 = vpop.f32.mrf.mxu0
    %839 = vmatprep.mubr.bf16.mxu0 0
    %840 = vmatmul.mubr.bf16.gmra.mxu0 %v722
    %v841 = vpop.f32.mrf.mxu0
    %v842 = vadd.f32 0.0, %v841
    %v843 = vpop.f32.mrf.mxu0
    %v844 = vpop.f32.mrf.mxu0
    %v845 = vadd.f32 0.0, %v844
    %v846 = vpop.f32.mrf.mxu0
    %847 = vmatprep.mubr.bf16.mxu0 0
    %848 = vmatmul.mubr.bf16.gmra.mxu0 %v723
    %v849 = vpop.f32.mrf.mxu0
    %v850 = vadd.f32 0.0, %v849
    %v851 = vpop.f32.mrf.mxu0
    %v852 = vpop.f32.mrf.mxu0
    %v853 = vadd.f32 0.0, %v852
    %v854 = vpop.f32.mrf.mxu0
    %855 = vmatprep.mubr.bf16.mxu0 0
    %856 = vmatmul.mubr.bf16.gmra.mxu0 %v724
    %v857 = vpop.f32.mrf.mxu0
    %v858 = vadd.f32 0.0, %v857
    %v859 = vpop.f32.mrf.mxu0
    %v860 = vpop.f32.mrf.mxu0
    %v861 = vadd.f32 0.0, %v860
    %v862 = vpop.f32.mrf.mxu0
    %863 = vmatprep.mubr.bf16.mxu0 0
    %864 = vmatmul.mubr.bf16.gmra.mxu0 %v725
    %v865 = vpop.f32.mrf.mxu0
    %v866 = vadd.f32 0.0, %v865
    %v867 = vpop.f32.mrf.mxu0
    %v868 = vpop.f32.mrf.mxu0
    %v869 = vadd.f32 0.0, %v868
    %v870 = vpop.f32.mrf.mxu0
    %871 = vmatprep.mubr.bf16.mxu0 0
    %872 = vmatmul.mubr.bf16.gmra.mxu0 %v726
    %v873 = vpop.f32.mrf.mxu0
    %v874 = vadd.f32 0.0, %v873
    %v875 = vpop.f32.mrf.mxu0
    %v876 = vpop.f32.mrf.mxu0
    %v877 = vadd.f32 0.0, %v876
    %v878 = vpop.f32.mrf.mxu0
    %879 = vdwg.mxu0
    %v880 = vpack.c.bf16 %v829, %v826
    %v881 = vpack.c.bf16 %v837, %v834
    %v882 = vpack.c.bf16 %v845, %v842
    %v883 = vpack.c.bf16 %v853, %v850
    %v884 = vpack.c.bf16 %v861, %v858
    %v885 = vpack.c.bf16 %v869, %v866
    %v886 = vpack.c.bf16 %v877, %v874
    %v894 = vunpack.c.l.b16 %v880
    %v895 = vunpack.c.h.b16 %v880
    %v896 = vunpack.c.l.b16 %v881
    %v897 = vunpack.c.h.b16 %v881
    %v898 = vunpack.c.l.b16 %v882
    %v899 = vunpack.c.h.b16 %v882
    %v900 = vunpack.c.l.b16 %v883
    %v901 = vunpack.c.h.b16 %v883
    %v902 = vunpack.c.l.b16 %v884
    %v903 = vunpack.c.h.b16 %v884
    %v904 = vunpack.c.l.b16 %v885
    %v905 = vunpack.c.h.b16 %v885
    %v906 = vunpack.c.l.b16 %v886
    %v907 = vunpack.c.h.b16 %v886
    %v908 = vpack.c.b16 %v894, %v894
    %v909 = vpack.c.b16 %v895, %v895
    %v910 = vpack.c.b16 %v896, %v896
    %v911 = vpack.c.b16 %v897, %v897
    %v912 = vpack.c.b16 %v898, %v898
    %v913 = vpack.c.b16 %v899, %v899
    %v914 = vpack.c.b16 %v900, %v900
    %v915 = vpack.c.b16 %v901, %v901
    %v916 = vpack.c.b16 %v902, %v902
    %v917 = vpack.c.b16 %v903, %v903
    %v918 = vpack.c.b16 %v904, %v904
    %v919 = vpack.c.b16 %v905, %v905
    %v920 = vpack.c.b16 %v906, %v906
    %v921 = vpack.c.b16 %v907, %v907
    %936 = vst [vmem:[#allocation2] sm:$0xf] %v908
    %937 = vst [vmem:[#allocation2 + $0x4] sm:$0xf] %v909
    %938 = vst [vmem:[#allocation2 + $0x8] sm:$0xf] %v910
    %939 = vst [vmem:[#allocation2 + $0xc] sm:$0xf] %v911
    %940 = vst [vmem:[#allocation2 + $0x10] sm:$0xf] %v912
    %941 = vst [vmem:[#allocation2 + $0x14] sm:$0xf] %v913
    %942 = vst [vmem:[#allocation2 + $0x18] sm:$0xf] %v914
    %943 = vst [vmem:[#allocation2 + $0x1c] sm:$0xf] %v915
    %944 = vst [vmem:[#allocation2 + $0x20] sm:$0xf] %v916
    %945 = vst [vmem:[#allocation2 + $0x24] sm:$0xf] %v917
    %946 = vst [vmem:[#allocation2 + $0x28] sm:$0xf] %v918
    %947 = vst [vmem:[#allocation2 + $0x2c] sm:$0xf] %v919
    %948 = vst [vmem:[#allocation2 + $0x30] sm:$0xf] %v920
    %949 = vst [vmem:[#allocation2 + $0x34] sm:$0xf] %v921
    %v950 = vld [vmem:[%s5] sm:$0x1]
    %v951 = vld [vmem:[%s4] sm:$0xf]
    %v952 = vld [vmem:[%s4 + $0x4] sm:$0xf]
    %v953 = vld [vmem:[%s4 + $0x8] sm:$0xf]
    %v954 = vld [vmem:[%s4 + $0xc] sm:$0xf]
    %v955 = vld [vmem:[%s4 + $0x10] sm:$0xf]
    %v956 = vld [vmem:[%s4 + $0x14] sm:$0xf]
    %v957 = vld [vmem:[%s4 + $0x18] sm:$0xf]
    %v958 = vld [vmem:[%s4 + $0x1c] sm:$0xf]
    %v959 = vld [vmem:[%s4 + $0x20] sm:$0xf]
    %v960 = vld [vmem:[%s4 + $0x24] sm:$0xf]
    %v961 = vld [vmem:[%s4 + $0x28] sm:$0xf]
    %v962 = vld [vmem:[%s4 + $0x2c] sm:$0xf]
    %v963 = vld [vmem:[%s4 + $0x30] sm:$0xf]
    %v964 = vld [vmem:[%s4 + $0x34] sm:$0xf]
    %v965 = vld [vmem:[%s4 + $0x38] sm:$0xf]
    %v966 = vld [vmem:[%s4 + $0x3c] sm:$0xf]
    %v983 = vunpack.c.l.b16 %v951
    %v984 = vunpack.c.l.b16 %v952
    %v985 = vunpack.c.l.b16 %v953
    %v986 = vunpack.c.l.b16 %v954
    %v987 = vunpack.c.l.b16 %v955
    %v988 = vunpack.c.l.b16 %v956
    %v989 = vunpack.c.l.b16 %v957
    %v990 = vunpack.c.l.b16 %v958
    %v991 = vunpack.c.l.b16 %v959
    %v992 = vunpack.c.l.b16 %v960
    %v993 = vunpack.c.l.b16 %v961
    %v994 = vunpack.c.l.b16 %v962
    %v995 = vunpack.c.l.b16 %v963
    %v996 = vunpack.c.l.b16 %v964
    %v997 = vunpack.c.l.b16 %v965
    %v998 = vunpack.c.l.b16 %v966
    %v999 = vpack.c.b16 %v984, %v983
    %v1000 = vpack.c.b16 %v986, %v985
    %v1001 = vpack.c.b16 %v988, %v987
    %v1002 = vpack.c.b16 %v990, %v989
    %v1003 = vpack.c.b16 %v992, %v991
    %v1004 = vpack.c.b16 %v994, %v993
    %v1005 = vpack.c.b16 %v996, %v995
    %v1006 = vpack.c.b16 %v998, %v997
    %1015 = vmatprep.subr.bf16.mxu0 0
    %1016 = vmatpush1.bf16.msra.mxu0 %v1006
    %1017 = vmatprep.subr.bf16.mxu0 0
    %1018 = vmatpush1.bf16.msra.mxu0 %v1005
    %1019 = vmatprep.subr.bf16.mxu0 0
    %1020 = vmatpush1.bf16.msra.mxu0 %v1004
    %1021 = vmatprep.subr.bf16.mxu0 0
    %1022 = vmatpush1.bf16.msra.mxu0 %v1003
    %1023 = vmatprep.subr.bf16.mxu0 0
    %1024 = vmatpush1.bf16.msra.mxu0 %v1002
    %1025 = vmatprep.subr.bf16.mxu0 0
    %1026 = vmatpush1.bf16.msra.mxu0 %v1001
    %1027 = vmatprep.subr.bf16.mxu0 0
    %1028 = vmatpush1.bf16.msra.mxu0 %v1000
    %1029 = vmatprep.subr.bf16.mxu0 0
    %1030 = vmatpush1.bf16.msra.mxu0 %v999
    %1031 = vmatprep.subr.bf16.mxu0 0
    %1032 = vmatpush2.bf16.msra.mxu0 0
    %1033 = vmatprep.subr.bf16.mxu0 0
    %1034 = vmatpush2.bf16.msra.mxu0 0
    %1035 = vmatprep.subr.bf16.mxu0 0
    %1036 = vmatpush2.bf16.msra.mxu0 0
    %1037 = vmatprep.subr.bf16.mxu0 0
    %1038 = vmatpush2.bf16.msra.mxu0 0
    %1039 = vmatprep.subr.bf16.mxu0 0
    %1040 = vmatpush2.bf16.msra.mxu0 0
    %1041 = vmatprep.subr.bf16.mxu0 0
    %1042 = vmatpush2.bf16.msra.mxu0 0
    %1043 = vmatprep.subr.bf16.mxu0 0
    %1044 = vmatpush2.bf16.msra.mxu0 0
    %1045 = vmatprep.subr.bf16.mxu0 0
    %1046 = vmatpush2.bf16.msra.mxu0 0
    %1047 = vmatprep.mubr.bf16.mxu0 0
    %1048 = vmatmul.mubr.bf16.gmra.mxu0 0
    %v1049 = vpop.f32.mrf.mxu0
    %v1050 = vadd.f32 0.0, %v1049
    %v1051 = vpop.f32.mrf.mxu0
    %v1052 = vpop.f32.mrf.mxu0
    %v1053 = vpop.f32.mrf.mxu0
    %1054 = vdwg.mxu0
    %v1055 = vld [vmem:[#allocation2] sm:$0xf]
    %v1056 = vunpack.c.l.bf16 %v1055
    %v1058 = vlaneseq
    %v1059 = vshrl.u32 %v1058, 7
    %v1060 = vsub.s32 0, %v1059
    %v1061 = vrot.slane %v950, %v1060
    %v1063 = vadd.f32 %v1056, %v1061
    %v1064 = vadd.f32 %v1063, %v1050
    %v1065 = vxor.u32 %v1064, 2147483648
    %v1066 = vmul.f32 %v1065, 1.442695
    %v1067 = vpow.pop %v1066
    %v1068 = vadd.f32 %v1067, 1.0
    %v1069 = vrcp.pop %v1068
    %v1070 = vmul.f32 1.0, %v1069
    %v1071 = vtanh.pop %v1064
    %v1072 = vmul.f32 %v1070, 0.0
    %1074 = vrot.lane.b32.xlu0 %v1071, 64
    %v1075 = vpop.permute.xlu0 %1074
    %v1077 = vmul.f32 %v1070, %v1075
    %1079 = vrot.lane.b32.xlu0 %v1077, 32
    %v1080 = vpop.permute.xlu0 %1079
    %v1082 = vadd.f32 %v1072, %v1080
    %v1083 = vtanh.pop %v1082
    %1085 = vrot.lane.b32.xlu0 %v1083, 64
    %v1086 = vpop.permute.xlu0 %1085
    %v1088 = vmul.f32 %v1070, %v1086
    %1090 = vrot.lane.b32.xlu0 %v1088, 32
    %v1091 = vpop.permute.xlu0 %1090
    %vm1093 = vcmask 261120
    %v1094 = vsel %vm1093, %v1091, 0.0
    %v1095 = vpack.c.bf16 %v1094, %v1094
    %1096 = vmatprep.subr.bf16.mxu0 0
    %1097 = vmatpush1.bf16.msra.mxu0 %v1006
    %1098 = vmatprep.subr.bf16.mxu0 0
    %1099 = vmatpush1.bf16.msra.mxu0 %v1005
    %1100 = vmatprep.subr.bf16.mxu0 0
    %1101 = vmatpush1.bf16.msra.mxu0 %v1004
    %1102 = vmatprep.subr.bf16.mxu0 0
    %1103 = vmatpush1.bf16.msra.mxu0 %v1003
    %1104 = vmatprep.subr.bf16.mxu0 0
    %1105 = vmatpush1.bf16.msra.mxu0 %v1002
    %1106 = vmatprep.subr.bf16.mxu0 0
    %1107 = vmatpush1.bf16.msra.mxu0 %v1001
    %1108 = vmatprep.subr.bf16.mxu0 0
    %1109 = vmatpush1.bf16.msra.mxu0 %v1000
    %1110 = vmatprep.subr.bf16.mxu0 0
    %1111 = vmatpush1.bf16.msra.mxu0 %v999
    %1112 = vmatprep.subr.bf16.mxu0 0
    %1113 = vmatpush2.bf16.msra.mxu0 0
    %1114 = vmatprep.subr.bf16.mxu0 0
    %1115 = vmatpush2.bf16.msra.mxu0 0
    %1116 = vmatprep.subr.bf16.mxu0 0
    %1117 = vmatpush2.bf16.msra.mxu0 0
    %1118 = vmatprep.subr.bf16.mxu0 0
    %1119 = vmatpush2.bf16.msra.mxu0 0
    %1120 = vmatprep.subr.bf16.mxu0 0
    %1121 = vmatpush2.bf16.msra.mxu0 0
    %1122 = vmatprep.subr.bf16.mxu0 0
    %1123 = vmatpush2.bf16.msra.mxu0 0
    %1124 = vmatprep.subr.bf16.mxu0 0
    %1125 = vmatpush2.bf16.msra.mxu0 0
    %1126 = vmatprep.subr.bf16.mxu0 0
    %1127 = vmatpush2.bf16.msra.mxu0 0
    %1128 = vmatprep.mubr.bf16.mxu0 0
    %1129 = vmatmul.mubr.bf16.gmra.mxu0 %v1095
    %v1130 = vpop.f32.mrf.mxu0
    %v1131 = vadd.f32 0.0, %v1130
    %v1132 = vpop.f32.mrf.mxu0
    %v1133 = vpop.f32.mrf.mxu0
    %v1134 = vpop.f32.mrf.mxu0
    %1135 = vdwg.mxu0
    %s1136 = scalar_lea.vmem [#allocation2], 4
    %v1137 = vld [vmem:[%s1136] sm:$0xf]
    %v1138 = vunpack.c.l.bf16 %v1137
    %v1139 = vadd.f32 %v1138, %v1061
    %v1140 = vadd.f32 %v1139, %v1131
    %v1141 = vxor.u32 %v1140, 2147483648
    %v1142 = vmul.f32 %v1141, 1.442695
    %v1143 = vpow.pop %v1142
    %v1144 = vadd.f32 %v1143, 1.0
    %v1145 = vrcp.pop %v1144
    %v1146 = vmul.f32 1.0, %v1145
    %v1147 = vtanh.pop %v1140
    %v1148 = vmul.f32 %v1146, %v1082
    %1150 = vrot.lane.b32.xlu0 %v1147, 64
    %v1151 = vpop.permute.xlu0 %1150
    %v1153 = vmul.f32 %v1146, %v1151
    %1155 = vrot.lane.b32.xlu0 %v1153, 32
    %v1156 = vpop.permute.xlu0 %1155
    %v1158 = vadd.f32 %v1148, %v1156
    %v1159 = vtanh.pop %v1158
    %1161 = vrot.lane.b32.xlu0 %v1159, 64
    %v1162 = vpop.permute.xlu0 %1161
    %v1164 = vmul.f32 %v1146, %v1162
    %1166 = vrot.lane.b32.xlu0 %v1164, 32
    %v1167 = vpop.permute.xlu0 %1166
    %v1169 = vsel %vm1093, %v1167, 0.0
    %v1170 = vpack.c.bf16 %v1169, %v1169
    %1171 = vmatprep.subr.bf16.mxu0 0
    %1172 = vmatpush1.bf16.msra.mxu0 %v1006
    %1173 = vmatprep.subr.bf16.mxu0 0
    %1174 = vmatpush1.bf16.msra.mxu0 %v1005
    %1175 = vmatprep.subr.bf16.mxu0 0
    %1176 = vmatpush1.bf16.msra.mxu0 %v1004
    %1177 = vmatprep.subr.bf16.mxu0 0
    %1178 = vmatpush1.bf16.msra.mxu0 %v1003
    %1179 = vmatprep.subr.bf16.mxu0 0
    %1180 = vmatpush1.bf16.msra.mxu0 %v1002
    %1181 = vmatprep.subr.bf16.mxu0 0
    %1182 = vmatpush1.bf16.msra.mxu0 %v1001
    %1183 = vmatprep.subr.bf16.mxu0 0
    %1184 = vmatpush1.bf16.msra.mxu0 %v1000
    %1185 = vmatprep.subr.bf16.mxu0 0
    %1186 = vmatpush1.bf16.msra.mxu0 %v999
    %1187 = vmatprep.subr.bf16.mxu0 0
    %1188 = vmatpush2.bf16.msra.mxu0 0
    %1189 = vmatprep.subr.bf16.mxu0 0
    %1190 = vmatpush2.bf16.msra.mxu0 0
    %1191 = vmatprep.subr.bf16.mxu0 0
    %1192 = vmatpush2.bf16.msra.mxu0 0
    %1193 = vmatprep.subr.bf16.mxu0 0
    %1194 = vmatpush2.bf16.msra.mxu0 0
    %1195 = vmatprep.subr.bf16.mxu0 0
    %1196 = vmatpush2.bf16.msra.mxu0 0
    %1197 = vmatprep.subr.bf16.mxu0 0
    %1198 = vmatpush2.bf16.msra.mxu0 0
    %1199 = vmatprep.subr.bf16.mxu0 0
    %1200 = vmatpush2.bf16.msra.mxu0 0
    %1201 = vmatprep.subr.bf16.mxu0 0
    %1202 = vmatpush2.bf16.msra.mxu0 0
    %1203 = vmatprep.mubr.bf16.mxu0 0
    %1204 = vmatmul.mubr.bf16.gmra.mxu0 %v1170
    %v1205 = vpop.f32.mrf.mxu0
    %v1206 = vadd.f32 0.0, %v1205
    %v1207 = vpop.f32.mrf.mxu0
    %v1208 = vpop.f32.mrf.mxu0
    %v1209 = vpop.f32.mrf.mxu0
    %1210 = vdwg.mxu0
    %s1211 = scalar_lea.vmem [#allocation2], 8
    %v1212 = vld [vmem:[%s1211] sm:$0xf]
    %v1213 = vunpack.c.l.bf16 %v1212
    %v1214 = vadd.f32 %v1213, %v1061
    %v1215 = vadd.f32 %v1214, %v1206
    %v1216 = vxor.u32 %v1215, 2147483648
    %v1217 = vmul.f32 %v1216, 1.442695
    %v1218 = vpow.pop %v1217
    %v1219 = vadd.f32 %v1218, 1.0
    %v1220 = vrcp.pop %v1219
    %v1221 = vmul.f32 1.0, %v1220
    %v1222 = vtanh.pop %v1215
    %v1223 = vmul.f32 %v1221, %v1158
    %1225 = vrot.lane.b32.xlu0 %v1222, 64
    %v1226 = vpop.permute.xlu0 %1225
    %v1228 = vmul.f32 %v1221, %v1226
    %1230 = vrot.lane.b32.xlu0 %v1228, 32
    %v1231 = vpop.permute.xlu0 %1230
    %v1233 = vadd.f32 %v1223, %v1231
    %v1234 = vtanh.pop %v1233
    %1236 = vrot.lane.b32.xlu0 %v1234, 64
    %v1237 = vpop.permute.xlu0 %1236
    %v1239 = vmul.f32 %v1221, %v1237
    %1241 = vrot.lane.b32.xlu0 %v1239, 32
    %v1242 = vpop.permute.xlu0 %1241
    %v1244 = vsel %vm1093, %v1242, 0.0
    %v1245 = vpack.c.bf16 %v1244, %v1244
    %1246 = vmatprep.subr.bf16.mxu0 0
    %1247 = vmatpush1.bf16.msra.mxu0 %v1006
    %1248 = vmatprep.subr.bf16.mxu0 0
    %1249 = vmatpush1.bf16.msra.mxu0 %v1005
    %1250 = vmatprep.subr.bf16.mxu0 0
    %1251 = vmatpush1.bf16.msra.mxu0 %v1004
    %1252 = vmatprep.subr.bf16.mxu0 0
    %1253 = vmatpush1.bf16.msra.mxu0 %v1003
    %1254 = vmatprep.subr.bf16.mxu0 0
    %1255 = vmatpush1.bf16.msra.mxu0 %v1002
    %1256 = vmatprep.subr.bf16.mxu0 0
    %1257 = vmatpush1.bf16.msra.mxu0 %v1001
    %1258 = vmatprep.subr.bf16.mxu0 0
    %1259 = vmatpush1.bf16.msra.mxu0 %v1000
    %1260 = vmatprep.subr.bf16.mxu0 0
    %1261 = vmatpush1.bf16.msra.mxu0 %v999
    %1262 = vmatprep.subr.bf16.mxu0 0
    %1263 = vmatpush2.bf16.msra.mxu0 0
    %1264 = vmatprep.subr.bf16.mxu0 0
    %1265 = vmatpush2.bf16.msra.mxu0 0
    %1266 = vmatprep.subr.bf16.mxu0 0
    %1267 = vmatpush2.bf16.msra.mxu0 0
    %1268 = vmatprep.subr.bf16.mxu0 0
    %1269 = vmatpush2.bf16.msra.mxu0 0
    %1270 = vmatprep.subr.bf16.mxu0 0
    %1271 = vmatpush2.bf16.msra.mxu0 0
    %1272 = vmatprep.subr.bf16.mxu0 0
    %1273 = vmatpush2.bf16.msra.mxu0 0
    %1274 = vmatprep.subr.bf16.mxu0 0
    %1275 = vmatpush2.bf16.msra.mxu0 0
    %1276 = vmatprep.subr.bf16.mxu0 0
    %1277 = vmatpush2.bf16.msra.mxu0 0
    %1278 = vmatprep.mubr.bf16.mxu0 0
    %1279 = vmatmul.mubr.bf16.gmra.mxu0 %v1245
    %v1280 = vpop.f32.mrf.mxu0
    %v1281 = vadd.f32 0.0, %v1280
    %v1282 = vpop.f32.mrf.mxu0
    %v1283 = vpop.f32.mrf.mxu0
    %v1284 = vpop.f32.mrf.mxu0
    %1285 = vdwg.mxu0
    %s1286 = scalar_lea.vmem [#allocation2], 12
    %v1287 = vld [vmem:[%s1286] sm:$0xf]
    %v1288 = vunpack.c.l.bf16 %v1287
    %v1289 = vadd.f32 %v1288, %v1061
    %v1290 = vadd.f32 %v1289, %v1281
    %v1291 = vxor.u32 %v1290, 2147483648
    %v1292 = vmul.f32 %v1291, 1.442695
    %v1293 = vpow.pop %v1292
    %v1294 = vadd.f32 %v1293, 1.0
    %v1295 = vrcp.pop %v1294
    %v1296 = vmul.f32 1.0, %v1295
    %v1297 = vtanh.pop %v1290
    %v1298 = vmul.f32 %v1296, %v1233
    %1300 = vrot.lane.b32.xlu0 %v1297, 64
    %v1301 = vpop.permute.xlu0 %1300
    %v1303 = vmul.f32 %v1296, %v1301
    %1305 = vrot.lane.b32.xlu0 %v1303, 32
    %v1306 = vpop.permute.xlu0 %1305
    %v1308 = vadd.f32 %v1298, %v1306
    %v1309 = vtanh.pop %v1308
    %1311 = vrot.lane.b32.xlu0 %v1309, 64
    %v1312 = vpop.permute.xlu0 %1311
    %v1314 = vmul.f32 %v1296, %v1312
    %1316 = vrot.lane.b32.xlu0 %v1314, 32
    %v1317 = vpop.permute.xlu0 %1316
    %v1319 = vsel %vm1093, %v1317, 0.0
    %v1320 = vpack.c.bf16 %v1319, %v1319
    %1321 = vmatprep.subr.bf16.mxu0 0
    %1322 = vmatpush1.bf16.msra.mxu0 %v1006
    %1323 = vmatprep.subr.bf16.mxu0 0
    %1324 = vmatpush1.bf16.msra.mxu0 %v1005
    %1325 = vmatprep.subr.bf16.mxu0 0
    %1326 = vmatpush1.bf16.msra.mxu0 %v1004
    %1327 = vmatprep.subr.bf16.mxu0 0
    %1328 = vmatpush1.bf16.msra.mxu0 %v1003
    %1329 = vmatprep.subr.bf16.mxu0 0
    %1330 = vmatpush1.bf16.msra.mxu0 %v1002
    %1331 = vmatprep.subr.bf16.mxu0 0
    %1332 = vmatpush1.bf16.msra.mxu0 %v1001
    %1333 = vmatprep.subr.bf16.mxu0 0
    %1334 = vmatpush1.bf16.msra.mxu0 %v1000
    %1335 = vmatprep.subr.bf16.mxu0 0
    %1336 = vmatpush1.bf16.msra.mxu0 %v999
    %1337 = vmatprep.subr.bf16.mxu0 0
    %1338 = vmatpush2.bf16.msra.mxu0 0
    %1339 = vmatprep.subr.bf16.mxu0 0
    %1340 = vmatpush2.bf16.msra.mxu0 0
    %1341 = vmatprep.subr.bf16.mxu0 0
    %1342 = vmatpush2.bf16.msra.mxu0 0
    %1343 = vmatprep.subr.bf16.mxu0 0
    %1344 = vmatpush2.bf16.msra.mxu0 0
    %1345 = vmatprep.subr.bf16.mxu0 0
    %1346 = vmatpush2.bf16.msra.mxu0 0
    %1347 = vmatprep.subr.bf16.mxu0 0
    %1348 = vmatpush2.bf16.msra.mxu0 0
    %1349 = vmatprep.subr.bf16.mxu0 0
    %1350 = vmatpush2.bf16.msra.mxu0 0
    %1351 = vmatprep.subr.bf16.mxu0 0
    %1352 = vmatpush2.bf16.msra.mxu0 0
    %1353 = vmatprep.mubr.bf16.mxu0 0
    %1354 = vmatmul.mubr.bf16.gmra.mxu0 %v1320
    %v1355 = vpop.f32.mrf.mxu0
    %v1356 = vadd.f32 0.0, %v1355
    %v1357 = vpop.f32.mrf.mxu0
    %v1358 = vpop.f32.mrf.mxu0
    %v1359 = vpop.f32.mrf.mxu0
    %1360 = vdwg.mxu0
    %s1361 = scalar_lea.vmem [#allocation2], 16
    %v1362 = vld [vmem:[%s1361] sm:$0xf]
    %v1363 = vunpack.c.l.bf16 %v1362
    %v1364 = vadd.f32 %v1363, %v1061
    %v1365 = vadd.f32 %v1364, %v1356
    %v1366 = vxor.u32 %v1365, 2147483648
    %v1367 = vmul.f32 %v1366, 1.442695
    %v1368 = vpow.pop %v1367
    %v1369 = vadd.f32 %v1368, 1.0
    %v1370 = vrcp.pop %v1369
    %v1371 = vmul.f32 1.0, %v1370
    %v1372 = vtanh.pop %v1365
    %v1373 = vmul.f32 %v1371, %v1308
    %1375 = vrot.lane.b32.xlu0 %v1372, 64
    %v1376 = vpop.permute.xlu0 %1375
    %v1378 = vmul.f32 %v1371, %v1376
    %1380 = vrot.lane.b32.xlu0 %v1378, 32
    %v1381 = vpop.permute.xlu0 %1380
    %v1383 = vadd.f32 %v1373, %v1381
    %v1384 = vtanh.pop %v1383
    %1386 = vrot.lane.b32.xlu0 %v1384, 64
    %v1387 = vpop.permute.xlu0 %1386
    %v1389 = vmul.f32 %v1371, %v1387
    %1391 = vrot.lane.b32.xlu0 %v1389, 32
    %v1392 = vpop.permute.xlu0 %1391
    %v1394 = vsel %vm1093, %v1392, 0.0
    %v1395 = vpack.c.bf16 %v1394, %v1394
    %1396 = vmatprep.subr.bf16.mxu0 0
    %1397 = vmatpush1.bf16.msra.mxu0 %v1006
    %1398 = vmatprep.subr.bf16.mxu0 0
    %1399 = vmatpush1.bf16.msra.mxu0 %v1005
    %1400 = vmatprep.subr.bf16.mxu0 0
    %1401 = vmatpush1.bf16.msra.mxu0 %v1004
    %1402 = vmatprep.subr.bf16.mxu0 0
    %1403 = vmatpush1.bf16.msra.mxu0 %v1003
    %1404 = vmatprep.subr.bf16.mxu0 0
    %1405 = vmatpush1.bf16.msra.mxu0 %v1002
    %1406 = vmatprep.subr.bf16.mxu0 0
    %1407 = vmatpush1.bf16.msra.mxu0 %v1001
    %1408 = vmatprep.subr.bf16.mxu0 0
    %1409 = vmatpush1.bf16.msra.mxu0 %v1000
    %1410 = vmatprep.subr.bf16.mxu0 0
    %1411 = vmatpush1.bf16.msra.mxu0 %v999
    %1412 = vmatprep.subr.bf16.mxu0 0
    %1413 = vmatpush2.bf16.msra.mxu0 0
    %1414 = vmatprep.subr.bf16.mxu0 0
    %1415 = vmatpush2.bf16.msra.mxu0 0
    %1416 = vmatprep.subr.bf16.mxu0 0
    %1417 = vmatpush2.bf16.msra.mxu0 0
    %1418 = vmatprep.subr.bf16.mxu0 0
    %1419 = vmatpush2.bf16.msra.mxu0 0
    %1420 = vmatprep.subr.bf16.mxu0 0
    %1421 = vmatpush2.bf16.msra.mxu0 0
    %1422 = vmatprep.subr.bf16.mxu0 0
    %1423 = vmatpush2.bf16.msra.mxu0 0
    %1424 = vmatprep.subr.bf16.mxu0 0
    %1425 = vmatpush2.bf16.msra.mxu0 0
    %1426 = vmatprep.subr.bf16.mxu0 0
    %1427 = vmatpush2.bf16.msra.mxu0 0
    %1428 = vmatprep.mubr.bf16.mxu0 0
    %1429 = vmatmul.mubr.bf16.gmra.mxu0 %v1395
    %v1430 = vpop.f32.mrf.mxu0
    %v1431 = vadd.f32 0.0, %v1430
    %v1432 = vpop.f32.mrf.mxu0
    %v1433 = vpop.f32.mrf.mxu0
    %v1434 = vpop.f32.mrf.mxu0
    %1435 = vdwg.mxu0
    %s1436 = scalar_lea.vmem [#allocation2], 20
    %v1437 = vld [vmem:[%s1436] sm:$0xf]
    %v1438 = vunpack.c.l.bf16 %v1437
    %v1439 = vadd.f32 %v1438, %v1061
    %v1440 = vadd.f32 %v1439, %v1431
    %v1441 = vxor.u32 %v1440, 2147483648
    %v1442 = vmul.f32 %v1441, 1.442695
    %v1443 = vpow.pop %v1442
    %v1444 = vadd.f32 %v1443, 1.0
    %v1445 = vrcp.pop %v1444
    %v1446 = vmul.f32 1.0, %v1445
    %v1447 = vtanh.pop %v1440
    %v1448 = vmul.f32 %v1446, %v1383
    %1450 = vrot.lane.b32.xlu0 %v1447, 64
    %v1451 = vpop.permute.xlu0 %1450
    %v1453 = vmul.f32 %v1446, %v1451
    %1455 = vrot.lane.b32.xlu0 %v1453, 32
    %v1456 = vpop.permute.xlu0 %1455
    %v1458 = vadd.f32 %v1448, %v1456
    %v1459 = vtanh.pop %v1458
    %1461 = vrot.lane.b32.xlu0 %v1459, 64
    %v1462 = vpop.permute.xlu0 %1461
    %v1464 = vmul.f32 %v1446, %v1462
    %1466 = vrot.lane.b32.xlu0 %v1464, 32
    %v1467 = vpop.permute.xlu0 %1466
    %v1469 = vsel %vm1093, %v1467, 0.0
    %v1470 = vpack.c.bf16 %v1469, %v1469
    %1471 = vmatprep.subr.bf16.mxu0 0
    %1472 = vmatpush1.bf16.msra.mxu0 %v1006
    %1473 = vmatprep.subr.bf16.mxu0 0
    %1474 = vmatpush1.bf16.msra.mxu0 %v1005
    %1475 = vmatprep.subr.bf16.mxu0 0
    %1476 = vmatpush1.bf16.msra.mxu0 %v1004
    %1477 = vmatprep.subr.bf16.mxu0 0
    %1478 = vmatpush1.bf16.msra.mxu0 %v1003
    %1479 = vmatprep.subr.bf16.mxu0 0
    %1480 = vmatpush1.bf16.msra.mxu0 %v1002
    %1481 = vmatprep.subr.bf16.mxu0 0
    %1482 = vmatpush1.bf16.msra.mxu0 %v1001
    %1483 = vmatprep.subr.bf16.mxu0 0
    %1484 = vmatpush1.bf16.msra.mxu0 %v1000
    %1485 = vmatprep.subr.bf16.mxu0 0
    %1486 = vmatpush1.bf16.msra.mxu0 %v999
    %1487 = vmatprep.subr.bf16.mxu0 0
    %1488 = vmatpush2.bf16.msra.mxu0 0
    %1489 = vmatprep.subr.bf16.mxu0 0
    %1490 = vmatpush2.bf16.msra.mxu0 0
    %1491 = vmatprep.subr.bf16.mxu0 0
    %1492 = vmatpush2.bf16.msra.mxu0 0
    %1493 = vmatprep.subr.bf16.mxu0 0
    %1494 = vmatpush2.bf16.msra.mxu0 0
    %1495 = vmatprep.subr.bf16.mxu0 0
    %1496 = vmatpush2.bf16.msra.mxu0 0
    %1497 = vmatprep.subr.bf16.mxu0 0
    %1498 = vmatpush2.bf16.msra.mxu0 0
    %1499 = vmatprep.subr.bf16.mxu0 0
    %1500 = vmatpush2.bf16.msra.mxu0 0
    %1501 = vmatprep.subr.bf16.mxu0 0
    %1502 = vmatpush2.bf16.msra.mxu0 0
    %1503 = vmatprep.mubr.bf16.mxu0 0
    %1504 = vmatmul.mubr.bf16.gmra.mxu0 %v1470
    %v1505 = vpop.f32.mrf.mxu0
    %v1506 = vadd.f32 0.0, %v1505
    %v1507 = vpop.f32.mrf.mxu0
    %v1508 = vpop.f32.mrf.mxu0
    %v1509 = vpop.f32.mrf.mxu0
    %1510 = vdwg.mxu0
    %s1511 = scalar_lea.vmem [#allocation2], 24
    %v1512 = vld [vmem:[%s1511] sm:$0xf]
    %v1513 = vunpack.c.l.bf16 %v1512
    %v1514 = vadd.f32 %v1513, %v1061
    %v1515 = vadd.f32 %v1514, %v1506
    %v1516 = vxor.u32 %v1515, 2147483648
    %v1517 = vmul.f32 %v1516, 1.442695
    %v1518 = vpow.pop %v1517
    %v1519 = vadd.f32 %v1518, 1.0
    %v1520 = vrcp.pop %v1519
    %v1521 = vmul.f32 1.0, %v1520
    %v1522 = vtanh.pop %v1515
    %v1523 = vmul.f32 %v1521, %v1458
    %1525 = vrot.lane.b32.xlu0 %v1522, 64
    %v1526 = vpop.permute.xlu0 %1525
    %v1528 = vmul.f32 %v1521, %v1526
    %1530 = vrot.lane.b32.xlu0 %v1528, 32
    %v1531 = vpop.permute.xlu0 %1530
    %v1533 = vadd.f32 %v1523, %v1531
    %v1534 = vtanh.pop %v1533
    %1536 = vrot.lane.b32.xlu0 %v1534, 64
    %v1537 = vpop.permute.xlu0 %1536
    %v1539 = vmul.f32 %v1521, %v1537
    %1541 = vrot.lane.b32.xlu0 %v1539, 32
    %v1542 = vpop.permute.xlu0 %1541
    %v1544 = vsel %vm1093, %v1542, 0.0
    %v1545 = vpack.c.bf16 %v1544, %v1544
    %1546 = vmatprep.subr.bf16.mxu0 0
    %1547 = vmatpush1.bf16.msra.mxu0 %v1006
    %1548 = vmatprep.subr.bf16.mxu0 0
    %1549 = vmatpush1.bf16.msra.mxu0 %v1005
    %1550 = vmatprep.subr.bf16.mxu0 0
    %1551 = vmatpush1.bf16.msra.mxu0 %v1004
    %1552 = vmatprep.subr.bf16.mxu0 0
    %1553 = vmatpush1.bf16.msra.mxu0 %v1003
    %1554 = vmatprep.subr.bf16.mxu0 0
    %1555 = vmatpush1.bf16.msra.mxu0 %v1002
    %1556 = vmatprep.subr.bf16.mxu0 0
    %1557 = vmatpush1.bf16.msra.mxu0 %v1001
    %1558 = vmatprep.subr.bf16.mxu0 0
    %1559 = vmatpush1.bf16.msra.mxu0 %v1000
    %1560 = vmatprep.subr.bf16.mxu0 0
    %1561 = vmatpush1.bf16.msra.mxu0 %v999
    %1562 = vmatprep.subr.bf16.mxu0 0
    %1563 = vmatpush2.bf16.msra.mxu0 0
    %1564 = vmatprep.subr.bf16.mxu0 0
    %1565 = vmatpush2.bf16.msra.mxu0 0
    %1566 = vmatprep.subr.bf16.mxu0 0
    %1567 = vmatpush2.bf16.msra.mxu0 0
    %1568 = vmatprep.subr.bf16.mxu0 0
    %1569 = vmatpush2.bf16.msra.mxu0 0
    %1570 = vmatprep.subr.bf16.mxu0 0
    %1571 = vmatpush2.bf16.msra.mxu0 0
    %1572 = vmatprep.subr.bf16.mxu0 0
    %1573 = vmatpush2.bf16.msra.mxu0 0
    %1574 = vmatprep.subr.bf16.mxu0 0
    %1575 = vmatpush2.bf16.msra.mxu0 0
    %1576 = vmatprep.subr.bf16.mxu0 0
    %1577 = vmatpush2.bf16.msra.mxu0 0
    %1578 = vmatprep.mubr.bf16.mxu0 0
    %1579 = vmatmul.mubr.bf16.gmra.mxu0 %v1545
    %v1580 = vpop.f32.mrf.mxu0
    %v1581 = vadd.f32 0.0, %v1580
    %v1582 = vpop.f32.mrf.mxu0
    %v1583 = vpop.f32.mrf.mxu0
    %v1584 = vpop.f32.mrf.mxu0
    %1585 = vdwg.mxu0
    %s1586 = scalar_lea.vmem [#allocation2], 28
    %v1587 = vld [vmem:[%s1586] sm:$0xf]
    %v1588 = vunpack.c.l.bf16 %v1587
    %v1589 = vadd.f32 %v1588, %v1061
    %v1590 = vadd.f32 %v1589, %v1581
    %v1591 = vxor.u32 %v1590, 2147483648
    %v1592 = vmul.f32 %v1591, 1.442695
    %v1593 = vpow.pop %v1592
    %v1594 = vadd.f32 %v1593, 1.0
    %v1595 = vrcp.pop %v1594
    %v1596 = vmul.f32 1.0, %v1595
    %v1597 = vtanh.pop %v1590
    %v1598 = vmul.f32 %v1596, %v1533
    %1600 = vrot.lane.b32.xlu0 %v1597, 64
    %v1601 = vpop.permute.xlu0 %1600
    %v1603 = vmul.f32 %v1596, %v1601
    %1605 = vrot.lane.b32.xlu0 %v1603, 32
    %v1606 = vpop.permute.xlu0 %1605
    %v1608 = vadd.f32 %v1598, %v1606
    %v1609 = vtanh.pop %v1608
    %1611 = vrot.lane.b32.xlu0 %v1609, 64
    %v1612 = vpop.permute.xlu0 %1611
    %v1614 = vmul.f32 %v1596, %v1612
    %1616 = vrot.lane.b32.xlu0 %v1614, 32
    %v1617 = vpop.permute.xlu0 %1616
    %v1619 = vsel %vm1093, %v1617, 0.0
    %v1620 = vpack.c.bf16 %v1619, %v1619
    %1621 = vmatprep.subr.bf16.mxu0 0
    %1622 = vmatpush1.bf16.msra.mxu0 %v1006
    %1623 = vmatprep.subr.bf16.mxu0 0
    %1624 = vmatpush1.bf16.msra.mxu0 %v1005
    %1625 = vmatprep.subr.bf16.mxu0 0
    %1626 = vmatpush1.bf16.msra.mxu0 %v1004
    %1627 = vmatprep.subr.bf16.mxu0 0
    %1628 = vmatpush1.bf16.msra.mxu0 %v1003
    %1629 = vmatprep.subr.bf16.mxu0 0
    %1630 = vmatpush1.bf16.msra.mxu0 %v1002
    %1631 = vmatprep.subr.bf16.mxu0 0
    %1632 = vmatpush1.bf16.msra.mxu0 %v1001
    %1633 = vmatprep.subr.bf16.mxu0 0
    %1634 = vmatpush1.bf16.msra.mxu0 %v1000
    %1635 = vmatprep.subr.bf16.mxu0 0
    %1636 = vmatpush1.bf16.msra.mxu0 %v999
    %1637 = vmatprep.subr.bf16.mxu0 0
    %1638 = vmatpush2.bf16.msra.mxu0 0
    %1639 = vmatprep.subr.bf16.mxu0 0
    %1640 = vmatpush2.bf16.msra.mxu0 0
    %1641 = vmatprep.subr.bf16.mxu0 0
    %1642 = vmatpush2.bf16.msra.mxu0 0
    %1643 = vmatprep.subr.bf16.mxu0 0
    %1644 = vmatpush2.bf16.msra.mxu0 0
    %1645 = vmatprep.subr.bf16.mxu0 0
    %1646 = vmatpush2.bf16.msra.mxu0 0
    %1647 = vmatprep.subr.bf16.mxu0 0
    %1648 = vmatpush2.bf16.msra.mxu0 0
    %1649 = vmatprep.subr.bf16.mxu0 0
    %1650 = vmatpush2.bf16.msra.mxu0 0
    %1651 = vmatprep.subr.bf16.mxu0 0
    %1652 = vmatpush2.bf16.msra.mxu0 0
    %1653 = vmatprep.mubr.bf16.mxu0 0
    %1654 = vmatmul.mubr.bf16.gmra.mxu0 %v1620
    %v1655 = vpop.f32.mrf.mxu0
    %v1656 = vadd.f32 0.0, %v1655
    %v1657 = vpop.f32.mrf.mxu0
    %v1658 = vpop.f32.mrf.mxu0
    %v1659 = vpop.f32.mrf.mxu0
    %1660 = vdwg.mxu0
    %s1661 = scalar_lea.vmem [#allocation2], 32
    %v1662 = vld [vmem:[%s1661] sm:$0xf]
    %v1663 = vunpack.c.l.bf16 %v1662
    %v1664 = vadd.f32 %v1663, %v1061
    %v1665 = vadd.f32 %v1664, %v1656
    %v1666 = vxor.u32 %v1665, 2147483648
    %v1667 = vmul.f32 %v1666, 1.442695
    %v1668 = vpow.pop %v1667
    %v1669 = vadd.f32 %v1668, 1.0
    %v1670 = vrcp.pop %v1669
    %v1671 = vmul.f32 1.0, %v1670
    %v1672 = vtanh.pop %v1665
    %v1673 = vmul.f32 %v1671, %v1608
    %1675 = vrot.lane.b32.xlu0 %v1672, 64
    %v1676 = vpop.permute.xlu0 %1675
    %v1678 = vmul.f32 %v1671, %v1676
    %1680 = vrot.lane.b32.xlu0 %v1678, 32
    %v1681 = vpop.permute.xlu0 %1680
    %v1683 = vadd.f32 %v1673, %v1681
    %v1684 = vtanh.pop %v1683
    %1686 = vrot.lane.b32.xlu0 %v1684, 64
    %v1687 = vpop.permute.xlu0 %1686
    %v1689 = vmul.f32 %v1671, %v1687
    %1691 = vrot.lane.b32.xlu0 %v1689, 32
    %v1692 = vpop.permute.xlu0 %1691
    %v1694 = vsel %vm1093, %v1692, 0.0
    %v1695 = vpack.c.bf16 %v1694, %v1694
    %1696 = vmatprep.subr.bf16.mxu0 0
    %1697 = vmatpush1.bf16.msra.mxu0 %v1006
    %1698 = vmatprep.subr.bf16.mxu0 0
    %1699 = vmatpush1.bf16.msra.mxu0 %v1005
    %1700 = vmatprep.subr.bf16.mxu0 0
    %1701 = vmatpush1.bf16.msra.mxu0 %v1004
    %1702 = vmatprep.subr.bf16.mxu0 0
    %1703 = vmatpush1.bf16.msra.mxu0 %v1003
    %1704 = vmatprep.subr.bf16.mxu0 0
    %1705 = vmatpush1.bf16.msra.mxu0 %v1002
    %1706 = vmatprep.subr.bf16.mxu0 0
    %1707 = vmatpush1.bf16.msra.mxu0 %v1001
    %1708 = vmatprep.subr.bf16.mxu0 0
    %1709 = vmatpush1.bf16.msra.mxu0 %v1000
    %1710 = vmatprep.subr.bf16.mxu0 0
    %1711 = vmatpush1.bf16.msra.mxu0 %v999
    %1712 = vmatprep.subr.bf16.mxu0 0
    %1713 = vmatpush2.bf16.msra.mxu0 0
    %1714 = vmatprep.subr.bf16.mxu0 0
    %1715 = vmatpush2.bf16.msra.mxu0 0
    %1716 = vmatprep.subr.bf16.mxu0 0
    %1717 = vmatpush2.bf16.msra.mxu0 0
    %1718 = vmatprep.subr.bf16.mxu0 0
    %1719 = vmatpush2.bf16.msra.mxu0 0
    %1720 = vmatprep.subr.bf16.mxu0 0
    %1721 = vmatpush2.bf16.msra.mxu0 0
    %1722 = vmatprep.subr.bf16.mxu0 0
    %1723 = vmatpush2.bf16.msra.mxu0 0
    %1724 = vmatprep.subr.bf16.mxu0 0
    %1725 = vmatpush2.bf16.msra.mxu0 0
    %1726 = vmatprep.subr.bf16.mxu0 0
    %1727 = vmatpush2.bf16.msra.mxu0 0
    %1728 = vmatprep.mubr.bf16.mxu0 0
    %1729 = vmatmul.mubr.bf16.gmra.mxu0 %v1695
    %v1730 = vpop.f32.mrf.mxu0
    %v1731 = vadd.f32 0.0, %v1730
    %v1732 = vpop.f32.mrf.mxu0
    %v1733 = vpop.f32.mrf.mxu0
    %v1734 = vpop.f32.mrf.mxu0
    %1735 = vdwg.mxu0
    %s1736 = scalar_lea.vmem [#allocation2], 36
    %v1737 = vld [vmem:[%s1736] sm:$0xf]
    %v1738 = vunpack.c.l.bf16 %v1737
    %v1739 = vadd.f32 %v1738, %v1061
    %v1740 = vadd.f32 %v1739, %v1731
    %v1741 = vxor.u32 %v1740, 2147483648
    %v1742 = vmul.f32 %v1741, 1.442695
    %v1743 = vpow.pop %v1742
    %v1744 = vadd.f32 %v1743, 1.0
    %v1745 = vrcp.pop %v1744
    %v1746 = vmul.f32 1.0, %v1745
    %v1747 = vtanh.pop %v1740
    %v1748 = vmul.f32 %v1746, %v1683
    %1750 = vrot.lane.b32.xlu0 %v1747, 64
    %v1751 = vpop.permute.xlu0 %1750
    %v1753 = vmul.f32 %v1746, %v1751
    %1755 = vrot.lane.b32.xlu0 %v1753, 32
    %v1756 = vpop.permute.xlu0 %1755
    %v1758 = vadd.f32 %v1748, %v1756
    %v1759 = vtanh.pop %v1758
    %1761 = vrot.lane.b32.xlu0 %v1759, 64
    %v1762 = vpop.permute.xlu0 %1761
    %v1764 = vmul.f32 %v1746, %v1762
    %1766 = vrot.lane.b32.xlu0 %v1764, 32
    %v1767 = vpop.permute.xlu0 %1766
    %v1769 = vsel %vm1093, %v1767, 0.0
    %v1770 = vpack.c.bf16 %v1769, %v1769
    %1771 = vmatprep.subr.bf16.mxu0 0
    %1772 = vmatpush1.bf16.msra.mxu0 %v1006
    %1773 = vmatprep.subr.bf16.mxu0 0
    %1774 = vmatpush1.bf16.msra.mxu0 %v1005
    %1775 = vmatprep.subr.bf16.mxu0 0
    %1776 = vmatpush1.bf16.msra.mxu0 %v1004
    %1777 = vmatprep.subr.bf16.mxu0 0
    %1778 = vmatpush1.bf16.msra.mxu0 %v1003
    %1779 = vmatprep.subr.bf16.mxu0 0
    %1780 = vmatpush1.bf16.msra.mxu0 %v1002
    %1781 = vmatprep.subr.bf16.mxu0 0
    %1782 = vmatpush1.bf16.msra.mxu0 %v1001
    %1783 = vmatprep.subr.bf16.mxu0 0
    %1784 = vmatpush1.bf16.msra.mxu0 %v1000
    %1785 = vmatprep.subr.bf16.mxu0 0
    %1786 = vmatpush1.bf16.msra.mxu0 %v999
    %1787 = vmatprep.subr.bf16.mxu0 0
    %1788 = vmatpush2.bf16.msra.mxu0 0
    %1789 = vmatprep.subr.bf16.mxu0 0
    %1790 = vmatpush2.bf16.msra.mxu0 0
    %1791 = vmatprep.subr.bf16.mxu0 0
    %1792 = vmatpush2.bf16.msra.mxu0 0
    %1793 = vmatprep.subr.bf16.mxu0 0
    %1794 = vmatpush2.bf16.msra.mxu0 0
    %1795 = vmatprep.subr.bf16.mxu0 0
    %1796 = vmatpush2.bf16.msra.mxu0 0
    %1797 = vmatprep.subr.bf16.mxu0 0
    %1798 = vmatpush2.bf16.msra.mxu0 0
    %1799 = vmatprep.subr.bf16.mxu0 0
    %1800 = vmatpush2.bf16.msra.mxu0 0
    %1801 = vmatprep.subr.bf16.mxu0 0
    %1802 = vmatpush2.bf16.msra.mxu0 0
    %1803 = vmatprep.mubr.bf16.mxu0 0
    %1804 = vmatmul.mubr.bf16.gmra.mxu0 %v1770
    %v1805 = vpop.f32.mrf.mxu0
    %v1806 = vadd.f32 0.0, %v1805
    %v1807 = vpop.f32.mrf.mxu0
    %v1808 = vpop.f32.mrf.mxu0
    %v1809 = vpop.f32.mrf.mxu0
    %1810 = vdwg.mxu0
    %s1811 = scalar_lea.vmem [#allocation2], 40
    %v1812 = vld [vmem:[%s1811] sm:$0xf]
    %v1813 = vunpack.c.l.bf16 %v1812
    %v1814 = vadd.f32 %v1813, %v1061
    %v1815 = vadd.f32 %v1814, %v1806
    %v1816 = vxor.u32 %v1815, 2147483648
    %v1817 = vmul.f32 %v1816, 1.442695
    %v1818 = vpow.pop %v1817
    %v1819 = vadd.f32 %v1818, 1.0
    %v1820 = vrcp.pop %v1819
    %v1821 = vmul.f32 1.0, %v1820
    %v1822 = vtanh.pop %v1815
    %v1823 = vmul.f32 %v1821, %v1758
    %1825 = vrot.lane.b32.xlu0 %v1822, 64
    %v1826 = vpop.permute.xlu0 %1825
    %v1828 = vmul.f32 %v1821, %v1826
    %1830 = vrot.lane.b32.xlu0 %v1828, 32
    %v1831 = vpop.permute.xlu0 %1830
    %v1833 = vadd.f32 %v1823, %v1831
    %v1834 = vtanh.pop %v1833
    %1836 = vrot.lane.b32.xlu0 %v1834, 64
    %v1837 = vpop.permute.xlu0 %1836
    %v1839 = vmul.f32 %v1821, %v1837
    %1841 = vrot.lane.b32.xlu0 %v1839, 32
    %v1842 = vpop.permute.xlu0 %1841
    %v1844 = vsel %vm1093, %v1842, 0.0
    %v1845 = vpack.c.bf16 %v1844, %v1844
    %1846 = vmatprep.subr.bf16.mxu0 0
    %1847 = vmatpush1.bf16.msra.mxu0 %v1006
    %1848 = vmatprep.subr.bf16.mxu0 0
    %1849 = vmatpush1.bf16.msra.mxu0 %v1005
    %1850 = vmatprep.subr.bf16.mxu0 0
    %1851 = vmatpush1.bf16.msra.mxu0 %v1004
    %1852 = vmatprep.subr.bf16.mxu0 0
    %1853 = vmatpush1.bf16.msra.mxu0 %v1003
    %1854 = vmatprep.subr.bf16.mxu0 0
    %1855 = vmatpush1.bf16.msra.mxu0 %v1002
    %1856 = vmatprep.subr.bf16.mxu0 0
    %1857 = vmatpush1.bf16.msra.mxu0 %v1001
    %1858 = vmatprep.subr.bf16.mxu0 0
    %1859 = vmatpush1.bf16.msra.mxu0 %v1000
    %1860 = vmatprep.subr.bf16.mxu0 0
    %1861 = vmatpush1.bf16.msra.mxu0 %v999
    %1862 = vmatprep.subr.bf16.mxu0 0
    %1863 = vmatpush2.bf16.msra.mxu0 0
    %1864 = vmatprep.subr.bf16.mxu0 0
    %1865 = vmatpush2.bf16.msra.mxu0 0
    %1866 = vmatprep.subr.bf16.mxu0 0
    %1867 = vmatpush2.bf16.msra.mxu0 0
    %1868 = vmatprep.subr.bf16.mxu0 0
    %1869 = vmatpush2.bf16.msra.mxu0 0
    %1870 = vmatprep.subr.bf16.mxu0 0
    %1871 = vmatpush2.bf16.msra.mxu0 0
    %1872 = vmatprep.subr.bf16.mxu0 0
    %1873 = vmatpush2.bf16.msra.mxu0 0
    %1874 = vmatprep.subr.bf16.mxu0 0
    %1875 = vmatpush2.bf16.msra.mxu0 0
    %1876 = vmatprep.subr.bf16.mxu0 0
    %1877 = vmatpush2.bf16.msra.mxu0 0
    %1878 = vmatprep.mubr.bf16.mxu0 0
    %1879 = vmatmul.mubr.bf16.gmra.mxu0 %v1845
    %v1880 = vpop.f32.mrf.mxu0
    %v1881 = vadd.f32 0.0, %v1880
    %v1882 = vpop.f32.mrf.mxu0
    %v1883 = vpop.f32.mrf.mxu0
    %v1884 = vpop.f32.mrf.mxu0
    %1885 = vdwg.mxu0
    %s1886 = scalar_lea.vmem [#allocation2], 44
    %v1887 = vld [vmem:[%s1886] sm:$0xf]
    %v1888 = vunpack.c.l.bf16 %v1887
    %v1889 = vadd.f32 %v1888, %v1061
    %v1890 = vadd.f32 %v1889, %v1881
    %v1891 = vxor.u32 %v1890, 2147483648
    %v1892 = vmul.f32 %v1891, 1.442695
    %v1893 = vpow.pop %v1892
    %v1894 = vadd.f32 %v1893, 1.0
    %v1895 = vrcp.pop %v1894
    %v1896 = vmul.f32 1.0, %v1895
    %v1897 = vtanh.pop %v1890
    %v1898 = vmul.f32 %v1896, %v1833
    %1900 = vrot.lane.b32.xlu0 %v1897, 64
    %v1901 = vpop.permute.xlu0 %1900
    %v1903 = vmul.f32 %v1896, %v1901
    %1905 = vrot.lane.b32.xlu0 %v1903, 32
    %v1906 = vpop.permute.xlu0 %1905
    %v1908 = vadd.f32 %v1898, %v1906
    %v1909 = vtanh.pop %v1908
    %1911 = vrot.lane.b32.xlu0 %v1909, 64
    %v1912 = vpop.permute.xlu0 %1911
    %v1914 = vmul.f32 %v1896, %v1912
    %1916 = vrot.lane.b32.xlu0 %v1914, 32
    %v1917 = vpop.permute.xlu0 %1916
    %v1919 = vsel %vm1093, %v1917, 0.0
    %v1920 = vpack.c.bf16 %v1919, %v1919
    %1921 = vmatprep.subr.bf16.mxu0 0
    %1922 = vmatpush1.bf16.msra.mxu0 %v1006
    %1923 = vmatprep.subr.bf16.mxu0 0
    %1924 = vmatpush1.bf16.msra.mxu0 %v1005
    %1925 = vmatprep.subr.bf16.mxu0 0
    %1926 = vmatpush1.bf16.msra.mxu0 %v1004
    %1927 = vmatprep.subr.bf16.mxu0 0
    %1928 = vmatpush1.bf16.msra.mxu0 %v1003
    %1929 = vmatprep.subr.bf16.mxu0 0
    %1930 = vmatpush1.bf16.msra.mxu0 %v1002
    %1931 = vmatprep.subr.bf16.mxu0 0
    %1932 = vmatpush1.bf16.msra.mxu0 %v1001
    %1933 = vmatprep.subr.bf16.mxu0 0
    %1934 = vmatpush1.bf16.msra.mxu0 %v1000
    %1935 = vmatprep.subr.bf16.mxu0 0
    %1936 = vmatpush1.bf16.msra.mxu0 %v999
    %1937 = vmatprep.subr.bf16.mxu0 0
    %1938 = vmatpush2.bf16.msra.mxu0 0
    %1939 = vmatprep.subr.bf16.mxu0 0
    %1940 = vmatpush2.bf16.msra.mxu0 0
    %1941 = vmatprep.subr.bf16.mxu0 0
    %1942 = vmatpush2.bf16.msra.mxu0 0
    %1943 = vmatprep.subr.bf16.mxu0 0
    %1944 = vmatpush2.bf16.msra.mxu0 0
    %1945 = vmatprep.subr.bf16.mxu0 0
    %1946 = vmatpush2.bf16.msra.mxu0 0
    %1947 = vmatprep.subr.bf16.mxu0 0
    %1948 = vmatpush2.bf16.msra.mxu0 0
    %1949 = vmatprep.subr.bf16.mxu0 0
    %1950 = vmatpush2.bf16.msra.mxu0 0
    %1951 = vmatprep.subr.bf16.mxu0 0
    %1952 = vmatpush2.bf16.msra.mxu0 0
    %1953 = vmatprep.mubr.bf16.mxu0 0
    %1954 = vmatmul.mubr.bf16.gmra.mxu0 %v1920
    %v1955 = vpop.f32.mrf.mxu0
    %v1956 = vadd.f32 0.0, %v1955
    %v1957 = vpop.f32.mrf.mxu0
    %v1958 = vpop.f32.mrf.mxu0
    %v1959 = vpop.f32.mrf.mxu0
    %1960 = vdwg.mxu0
    %s1961 = scalar_lea.vmem [#allocation2], 48
    %v1962 = vld [vmem:[%s1961] sm:$0xf]
    %v1963 = vunpack.c.l.bf16 %v1962
    %v1964 = vadd.f32 %v1963, %v1061
    %v1965 = vadd.f32 %v1964, %v1956
    %v1966 = vxor.u32 %v1965, 2147483648
    %v1967 = vmul.f32 %v1966, 1.442695
    %v1968 = vpow.pop %v1967
    %v1969 = vadd.f32 %v1968, 1.0
    %v1970 = vrcp.pop %v1969
    %v1971 = vmul.f32 1.0, %v1970
    %v1972 = vtanh.pop %v1965
    %v1973 = vmul.f32 %v1971, %v1908
    %1975 = vrot.lane.b32.xlu0 %v1972, 64
    %v1976 = vpop.permute.xlu0 %1975
    %v1978 = vmul.f32 %v1971, %v1976
    %1980 = vrot.lane.b32.xlu0 %v1978, 32
    %v1981 = vpop.permute.xlu0 %1980
    %v1983 = vadd.f32 %v1973, %v1981
    %v1984 = vtanh.pop %v1983
    %1986 = vrot.lane.b32.xlu0 %v1984, 64
    %v1987 = vpop.permute.xlu0 %1986
    %v1989 = vmul.f32 %v1971, %v1987
    %1991 = vrot.lane.b32.xlu0 %v1989, 32
    %v1992 = vpop.permute.xlu0 %1991
    %v1994 = vsel %vm1093, %v1992, 0.0
    %v1995 = vpack.c.bf16 %v1994, %v1994
    %1996 = vmatprep.subr.bf16.mxu0 0
    %1997 = vmatpush1.bf16.msra.mxu0 %v1006
    %1998 = vmatprep.subr.bf16.mxu0 0
    %1999 = vmatpush1.bf16.msra.mxu0 %v1005
    %2000 = vmatprep.subr.bf16.mxu0 0
    %2001 = vmatpush1.bf16.msra.mxu0 %v1004
    %2002 = vmatprep.subr.bf16.mxu0 0
    %2003 = vmatpush1.bf16.msra.mxu0 %v1003
    %2004 = vmatprep.subr.bf16.mxu0 0
    %2005 = vmatpush1.bf16.msra.mxu0 %v1002
    %2006 = vmatprep.subr.bf16.mxu0 0
    %2007 = vmatpush1.bf16.msra.mxu0 %v1001
    %2008 = vmatprep.subr.bf16.mxu0 0
    %2009 = vmatpush1.bf16.msra.mxu0 %v1000
    %2010 = vmatprep.subr.bf16.mxu0 0
    %2011 = vmatpush1.bf16.msra.mxu0 %v999
    %2012 = vmatprep.subr.bf16.mxu0 0
    %2013 = vmatpush2.bf16.msra.mxu0 0
    %2014 = vmatprep.subr.bf16.mxu0 0
    %2015 = vmatpush2.bf16.msra.mxu0 0
    %2016 = vmatprep.subr.bf16.mxu0 0
    %2017 = vmatpush2.bf16.msra.mxu0 0
    %2018 = vmatprep.subr.bf16.mxu0 0
    %2019 = vmatpush2.bf16.msra.mxu0 0
    %2020 = vmatprep.subr.bf16.mxu0 0
    %2021 = vmatpush2.bf16.msra.mxu0 0
    %2022 = vmatprep.subr.bf16.mxu0 0
    %2023 = vmatpush2.bf16.msra.mxu0 0
    %2024 = vmatprep.subr.bf16.mxu0 0
    %2025 = vmatpush2.bf16.msra.mxu0 0
    %2026 = vmatprep.subr.bf16.mxu0 0
    %2027 = vmatpush2.bf16.msra.mxu0 0
    %2028 = vmatprep.mubr.bf16.mxu0 0
    %2029 = vmatmul.mubr.bf16.gmra.mxu0 %v1995
    %v2030 = vpop.f32.mrf.mxu0
    %v2031 = vadd.f32 0.0, %v2030
    %v2032 = vpop.f32.mrf.mxu0
    %v2033 = vpop.f32.mrf.mxu0
    %v2034 = vpop.f32.mrf.mxu0
    %2035 = vdwg.mxu0
    %s2036 = scalar_lea.vmem [#allocation2], 52
    %v2037 = vld [vmem:[%s2036] sm:$0xf]
    %v2038 = vunpack.c.l.bf16 %v2037
    %v2039 = vadd.f32 %v2038, %v1061
    %v2040 = vadd.f32 %v2039, %v2031
    %v2041 = vxor.u32 %v2040, 2147483648
    %v2042 = vmul.f32 %v2041, 1.442695
    %v2043 = vpow.pop %v2042
    %v2044 = vadd.f32 %v2043, 1.0
    %v2045 = vrcp.pop %v2044
    %v2046 = vmul.f32 1.0, %v2045
    %v2047 = vtanh.pop %v2040
    %v2048 = vmul.f32 %v2046, %v1983
    %2050 = vrot.lane.b32.xlu0 %v2047, 64
    %v2051 = vpop.permute.xlu0 %2050
    %v2053 = vmul.f32 %v2046, %v2051
    %2055 = vrot.lane.b32.xlu0 %v2053, 32
    %v2056 = vpop.permute.xlu0 %2055
    %v2058 = vadd.f32 %v2048, %v2056
    %v2059 = vtanh.pop %v2058
    %2061 = vrot.lane.b32.xlu0 %v2059, 64
    %v2062 = vpop.permute.xlu0 %2061
    %v2064 = vmul.f32 %v2046, %v2062
    %2066 = vrot.lane.b32.xlu0 %v2064, 32
    %v2067 = vpop.permute.xlu0 %2066
    %v2069 = vsel %vm1093, %v2067, 0.0
    %v2070 = vpack.c.bf16 %v2069, %v2069
    %v2071 = vld [vmem:[#allocation7] sm:$0xf]
    %v2072 = vld [vmem:[#allocation7 + $0x4] sm:$0xf]
    %v2073 = vld [vmem:[#allocation7 + $0x8] sm:$0xf]
    %v2074 = vld [vmem:[#allocation7 + $0xc] sm:$0xf]
    %v2075 = vld [vmem:[#allocation7 + $0x10] sm:$0xf]
    %v2076 = vld [vmem:[#allocation7 + $0x14] sm:$0xf]
    %v2077 = vld [vmem:[#allocation7 + $0x18] sm:$0xf]
    %v2078 = vld [vmem:[#allocation7 + $0x1c] sm:$0xf]
    %v2079 = vld [vmem:[#allocation7 + $0x20] sm:$0xf]
    %v2080 = vld [vmem:[#allocation7 + $0x24] sm:$0xf]
    %v2081 = vld [vmem:[#allocation7 + $0x28] sm:$0xf]
    %v2082 = vld [vmem:[#allocation7 + $0x2c] sm:$0xf]
    %v2083 = vld [vmem:[#allocation7 + $0x30] sm:$0xf]
    %v2084 = vld [vmem:[#allocation7 + $0x34] sm:$0xf]
    %v2085 = vld [vmem:[#allocation7 + $0x38] sm:$0xf]
    %v2086 = vld [vmem:[#allocation7 + $0x3c] sm:$0xf]
    %v2087 = vld [vmem:[#allocation8] sm:$0x1]
    %v2089 = vlaneseq
    %v2090 = vshrl.u32 %v2089, 7
    %v2091 = vsub.s32 0, %v2090
    %v2092 = vrot.slane %v2087, %v2091
    %v2110 = vunpack.c.l.b16 %v2071
    %v2111 = vunpack.c.l.b16 %v2072
    %v2112 = vunpack.c.l.b16 %v2073
    %v2113 = vunpack.c.l.b16 %v2074
    %v2114 = vunpack.c.l.b16 %v2075
    %v2115 = vunpack.c.l.b16 %v2076
    %v2116 = vunpack.c.l.b16 %v2077
    %v2117 = vunpack.c.l.b16 %v2078
    %v2118 = vunpack.c.l.b16 %v2079
    %v2119 = vunpack.c.l.b16 %v2080
    %v2120 = vunpack.c.l.b16 %v2081
    %v2121 = vunpack.c.l.b16 %v2082
    %v2122 = vunpack.c.l.b16 %v2083
    %v2123 = vunpack.c.l.b16 %v2084
    %v2124 = vunpack.c.l.b16 %v2085
    %v2125 = vunpack.c.l.b16 %v2086
    %v2126 = vpack.c.b16 %v2111, %v2110
    %v2127 = vpack.c.b16 %v2113, %v2112
    %v2128 = vpack.c.b16 %v2115, %v2114
    %v2129 = vpack.c.b16 %v2117, %v2116
    %v2130 = vpack.c.b16 %v2119, %v2118
    %v2131 = vpack.c.b16 %v2121, %v2120
    %v2132 = vpack.c.b16 %v2123, %v2122
    %v2133 = vpack.c.b16 %v2125, %v2124
    %2142 = vmatprep.subr.bf16.mxu0 0
    %2143 = vmatpush1.bf16.msra.mxu0 %v2133
    %2144 = vmatprep.subr.bf16.mxu0 0
    %2145 = vmatpush1.bf16.msra.mxu0 %v2132
    %2146 = vmatprep.subr.bf16.mxu0 0
    %2147 = vmatpush1.bf16.msra.mxu0 %v2131
    %2148 = vmatprep.subr.bf16.mxu0 0
    %2149 = vmatpush1.bf16.msra.mxu0 %v2130
    %2150 = vmatprep.subr.bf16.mxu0 0
    %2151 = vmatpush1.bf16.msra.mxu0 %v2129
    %2152 = vmatprep.subr.bf16.mxu0 0
    %2153 = vmatpush1.bf16.msra.mxu0 %v2128
    %2154 = vmatprep.subr.bf16.mxu0 0
    %2155 = vmatpush1.bf16.msra.mxu0 %v2127
    %2156 = vmatprep.subr.bf16.mxu0 0
    %2157 = vmatpush1.bf16.msra.mxu0 %v2126
    %2158 = vmatprep.subr.bf16.mxu0 0
    %2159 = vmatpush2.bf16.msra.mxu0 0
    %2160 = vmatprep.subr.bf16.mxu0 0
    %2161 = vmatpush2.bf16.msra.mxu0 0
    %2162 = vmatprep.subr.bf16.mxu0 0
    %2163 = vmatpush2.bf16.msra.mxu0 0
    %2164 = vmatprep.subr.bf16.mxu0 0
    %2165 = vmatpush2.bf16.msra.mxu0 0
    %2166 = vmatprep.subr.bf16.mxu0 0
    %2167 = vmatpush2.bf16.msra.mxu0 0
    %2168 = vmatprep.subr.bf16.mxu0 0
    %2169 = vmatpush2.bf16.msra.mxu0 0
    %2170 = vmatprep.subr.bf16.mxu0 0
    %2171 = vmatpush2.bf16.msra.mxu0 0
    %2172 = vmatprep.subr.bf16.mxu0 0
    %2173 = vmatpush2.bf16.msra.mxu0 0
    %2174 = vmatprep.mubr.bf16.mxu0 0
    %2175 = vmatmul.mubr.bf16.gmra.mxu0 %v2070
    %v2176 = vpop.f32.mrf.mxu0
    %v2177 = vadd.f32 %v2092, %v2176
    %v2178 = vpop.f32.mrf.mxu0
    %v2179 = vpop.f32.mrf.mxu0
    %v2180 = vpop.f32.mrf.mxu0
    %2181 = vdwg.mxu0
    %2182 = vst [vmem:[%s8] sm:$0xff] %v2177
    // Predicated region
    $region50: #{cnn_lstm_forward.1} parent=1 // pred_check
      _
    $region51: #{cnn_lstm_forward.1} parent=1 // pred_check_branch
      %2184 = sbr.rel (0) target = $region53
    $region52: #{cnn_lstm_forward.1} parent=1 // pred_region
      _
    $region53: #{cnn_lstm_forward.1} parent=1 // pred_fallthru
      _
    // Predicated region
    $region54: #{cnn_lstm_forward.1} parent=1 // pred_check
      _
    $region55: #{cnn_lstm_forward.1} parent=1 // pred_check_branch
      %2186 = sbr.rel (0) target = $region57
    $region56: #{cnn_lstm_forward.1} parent=1 // pred_region
      _
    $region57: #{cnn_lstm_forward.1} parent=1 // pred_fallthru
      _
    %2187 = vsyncpa [#allocation4], 1
    %2188 = vsyncpa [#allocation6], 1
    %2189 = vsyncpa [#allocation9], 1

</llo_original>
